<compile_context>
chip_gen: v6e
topology: v6e:2x2x1
jax: 0.10.0
libtpu: 0.0.40
codegen_flags: <defaults>
</compile_context>

<pallas_src>
import math
import functools

import jax
import jax.numpy as jnp
from jax.experimental import pallas as pl
from jax.experimental.pallas import tpu as pltpu

_LN_EPS = 1e-5


# ----------------------------- small helpers ------------------------------
@functools.lru_cache(maxsize=None)
def _vmem_capacity_bytes():
    try:
        return int(getattr(pltpu.get_tpu_info(), "vmem_capacity_bytes"))
    except Exception:
        return None


def _vmem_limit_bytes():
    cap = _vmem_capacity_bytes()
    if cap is None:
        return None
    return int(cap * 3 // 4)          # leave headroom for Mosaic internal scratch


def _compiler_params(dim_sems):
    kw = dict(dimension_semantics=dim_sems)
    lim = _vmem_limit_bytes()
    if lim is not None:
        kw["vmem_limit_bytes"] = lim
    return pltpu.CompilerParams(**kw)


def _const_spec(shape):
    """BlockSpec for a grid-invariant operand (same block every grid step)."""
    zeros = (0,) * len(shape)
    return pl.BlockSpec(shape, lambda *_: zeros)


def _pick_q_tile(seq):
    return seq if seq <= 128 else 128


def _pick_row_tile(m):
    """Row tile for the MLP.  Capped at 256 unless a large (>96 MiB) VMEM is
    detected (v5e/v6e), per the v7x 64 MiB budget."""
    if m <= 256:
        return m                       # full dim -> always a legal block
    cap = _vmem_capacity_bytes()
    big_vmem = cap is not None and cap > 96 * 1024 * 1024
    tm_max = 512 if big_vmem else 256
    for tm in (tm_max, 256, 128):
        if tm <= m:
            return tm
    return m


def _pick_ffn_tile(d_ffn):
    """d_ffn streaming tile; must divide d_ffn exactly (reduction axis)."""
    for tf in (1024, 512, 256, 128):
        if tf <= d_ffn and d_ffn % tf == 0:
            return tf
    return d_ffn


def _layernorm_f32(x, g, b):
    mu = jnp.mean(x, axis=-1, keepdims=True)
    var = jnp.mean(jnp.square(x - mu), axis=-1, keepdims=True)
    return (x - mu) * jax.lax.rsqrt(var + _LN_EPS) * g + b


def _erf_f32(x):
    # Abramowitz & Stegun 7.1.26 (|error| < 1.5e-7) — only exp/mul/add/where,
    # all guaranteed to lower in Mosaic.
    a1, a2, a3, a4, a5 = (0.254829592, -0.284496736, 1.421413741,
                          -1.453152027, 1.061405429)
    p = 0.3275911
    ax = jnp.abs(x)
    t = 1.0 / (1.0 + p * ax)
    poly = ((((a5 * t + a4) * t + a3) * t + a2) * t + a1) * t
    y = 1.0 - poly * jnp.exp(-ax * ax)
    return jnp.where(x < 0.0, -y, y)


def _gelu_exact_f32(x):
    # nn.GELU() default = exact erf GELU.
    return 0.5 * x * (1.0 + _erf_f32(x * (1.0 / math.sqrt(2.0))))


# --------------------------------------------------------------------------
# Kernels
# --------------------------------------------------------------------------
def attn_block_kernel(xq_ref, xkv_ref, g_ref, be_ref, wq_ref, bq_ref,
                      wk_ref, bk_ref, wv_ref, bv_ref, wo_ref, bo_ref,
                      o_ref, *, n_heads, d_k):
    # xq_ref: (1, tq, d_model) query rows (+ residual); xkv_ref: (1, seq, d_model)
    xq = xq_ref[0].astype(jnp.float32)
    xkv = xkv_ref[0].astype(jnp.float32)
    g = g_ref[...].astype(jnp.float32)
    be = be_ref[...].astype(jnp.float32)
    xq_n = _layernorm_f32(xq, g, be)
    xkv_n = _layernorm_f32(xkv, g, be)

    mx = wq_ref.dtype                                   # native MXU dtype (bf16)
    q = jnp.dot(xq_n.astype(mx), wq_ref[...],
                preferred_element_type=jnp.float32) + bq_ref[...].astype(jnp.float32)
    k = jnp.dot(xkv_n.astype(mx), wk_ref[...],
                preferred_element_type=jnp.float32) + bk_ref[...].astype(jnp.float32)
    v = jnp.dot(xkv_n.astype(mx), wv_ref[...],
                preferred_element_type=jnp.float32) + bv_ref[...].astype(jnp.float32)

    q_mx = q.astype(mx)                                 # (tq, d_model)
    kT_mx = k.astype(mx).T                              # one transpose for all heads
    v_mx = v.astype(mx)                                 # (seq, d_model)

    scale = 1.0 / math.sqrt(d_k)
    ctx_heads = []
    for h in range(n_heads):                            # static unroll over heads
        sl = slice(h * d_k, (h + 1) * d_k)
        s = jnp.dot(q_mx[:, sl], kT_mx[sl, :],
                    preferred_element_type=jnp.float32) * scale      # (tq, seq)
        s = s - jnp.max(s, axis=-1, keepdims=True)
        p = jnp.exp(s)
        p = p * pl.reciprocal(jnp.sum(p, axis=-1, keepdims=True), approx=True)
        # TODO(synk): training-mode scores dropout not emitted (eval identity).
        ctx_heads.append(jnp.dot(p.astype(mx), v_mx[:, sl],
                                 preferred_element_type=jnp.float32))  # (tq, d_k)

    # Concatenate heads, then ONE full-K output projection (no per-head RMW).
    ctx = jnp.concatenate(ctx_heads, axis=-1).astype(mx)              # (tq, d_model)
    out = jnp.dot(ctx, wo_ref[...],
                  preferred_element_type=jnp.float32) + bo_ref[...].astype(jnp.float32)
    o_ref[0] = (xq + out).astype(o_ref.dtype)                         # residual


def mlp_block_kernel(x_ref, g_ref, be_ref, w1_ref, b1_ref, w2_ref, b2_ref,
                     o_ref, acc_ref):
    # x_ref/o_ref: (tm, d_model); w1 block: (d_model, tf); w2 block: (tf, d_model)
    k = pl.program_id(1)

    @pl.when(k == 0)
    def _():
        acc_ref[...] = jnp.zeros_like(acc_ref)

    xf = x_ref[...].astype(jnp.float32)
    xn = _layernorm_f32(xf, g_ref[...].astype(jnp.float32),
                        be_ref[...].astype(jnp.float32))

    mx = w1_ref.dtype
    h = jnp.dot(xn.astype(mx), w1_ref[...],
                preferred_element_type=jnp.float32) + b1_ref[...].astype(jnp.float32)
    h = _gelu_exact_f32(h)
    # TODO(synk): training-mode dropout not emitted (eval identity).
    acc_ref[...] += jnp.dot(h.astype(w2_ref.dtype), w2_ref[...],
                            preferred_element_type=jnp.float32)

    @pl.when(k == pl.num_programs(1) - 1)
    def _():
        o_ref[...] = (xf + acc_ref[...] +
                      b2_ref[...].astype(jnp.float32)).astype(o_ref.dtype)


# --------------------------------------------------------------------------
# Wrappers
# --------------------------------------------------------------------------
def attn_block_forward(x, p, *, n_heads, mxu_dtype=jnp.bfloat16):
    """out = x + Attention(LayerNorm1(x)); grid = (batch, q_tiles), both parallel."""
    bz, seq, d_model = x.shape
    assert d_model % n_heads == 0
    d_k = d_model // n_heads
    tq = _pick_q_tile(seq)
    n_q = pl.cdiv(seq, tq)
    mx = mxu_dtype if mxu_dtype is not None else x.dtype

    return pl.pallas_call(
        functools.partial(attn_block_kernel, n_heads=n_heads, d_k=d_k),
        out_shape=jax.ShapeDtypeStruct((bz, seq, d_model), x.dtype),
        grid=(bz, n_q),
        in_specs=[
            pl.BlockSpec((1, tq, d_model), lambda b, qi: (b, qi, 0)),   # x (q rows)
            pl.BlockSpec((1, seq, d_model), lambda b, qi: (b, 0, 0)),   # x (full seq)
            _const_spec((1, d_model)),             # ln1 gamma
            _const_spec((1, d_model)),             # ln1 beta
            _const_spec((d_model, d_model)),       # Wq
            _const_spec((1, d_model)),             # bq
            _const_spec((d_model, d_model)),       # Wk
            _const_spec((1, d_model)),             # bk
            _const_spec((d_model, d_model)),       # Wv
            _const_spec((1, d_model)),             # bv
            _const_spec((d_model, d_model)),       # Wo
            _const_spec((1, d_model)),             # bo
        ],
        out_specs=pl.BlockSpec((1, tq, d_model), lambda b, qi: (b, qi, 0)),
        compiler_params=_compiler_params(("parallel", "parallel")),
    )(x, x,
      p["ln1_g"].reshape(1, d_model), p["ln1_b"].reshape(1, d_model),
      p["wq"].astype(mx), p["bq"].reshape(1, d_model),
      p["wk"].astype(mx), p["bk"].reshape(1, d_model),
      p["wv"].astype(mx), p["bv"].reshape(1, d_model),
      p["wo"].astype(mx), p["bo"].reshape(1, d_model))


def mlp_block_forward(x, p, *, mxu_dtype=jnp.bfloat16):
    """out = x + MLP(LayerNorm2(x)); rows tiled (parallel) x d_ffn streamed (arbitrary)."""
    bz, seq, d_model = x.shape
    d_ffn = p["w1"].shape[1]
    m = bz * seq
    tm = _pick_row_tile(m)
    tf = _pick_ffn_tile(d_ffn)
    n_rows = pl.cdiv(m, tm)
    n_ffn = d_ffn // tf
    mx = mxu_dtype if mxu_dtype is not None else x.dtype

    x2d = x.reshape(m, d_model)          # layout-preserving reshape (no copy)

    out2d = pl.pallas_call(
        mlp_block_kernel,
        out_shape=jax.ShapeDtypeStruct((m, d_model), x.dtype),
        grid=(n_rows, n_ffn),
        in_specs=[
            pl.BlockSpec((tm, d_model), lambda i, k: (i, 0)),   # x rows
            _const_spec((1, d_model)),                          # ln2 gamma
            _const_spec((1, d_model)),                          # ln2 beta
            pl.BlockSpec((d_model, tf), lambda i, k: (0, k)),   # W1 column block
            pl.BlockSpec((1, tf),       lambda i, k: (0, k)),   # b1 block
            pl.BlockSpec((tf, d_model), lambda i, k: (k, 0)),   # W2 row block
            _const_spec((1, d_model)),                          # b2
        ],
        out_specs=pl.BlockSpec((tm, d_model), lambda i, k: (i, 0)),
        scratch_shapes=[pltpu.VMEM((tm, d_model), jnp.float32)],
        compiler_params=_compiler_params(("parallel", "arbitrary")),
    )(x2d,
      p["ln2_g"].reshape(1, d_model), p["ln2_b"].reshape(1, d_model),
      p["w1"].astype(mx), p["b1"].reshape(1, d_ffn),
      p["w2"].astype(mx), p["b2"].reshape(1, d_model))

    return out2d.reshape(bz, seq, d_model)


def encoder_forward(x, layer_params, *, n_heads, mxu_dtype=jnp.bfloat16):
    for p in layer_params:
        x = attn_block_forward(x, p, n_heads=n_heads, mxu_dtype=mxu_dtype)
        x = mlp_block_forward(x, p, mxu_dtype=mxu_dtype)
    return x


# --------------------------------------------------------------------------
# Params + pure-JAX reference (f32, PyTorch eval-mode semantics)
# --------------------------------------------------------------------------
def _init_linear(key, fan_in, fan_out, dtype):
    kw, kb = jax.random.split(key)
    lim = 1.0 / math.sqrt(fan_in)
    w = jax.random.uniform(kw, (fan_in, fan_out), dtype, -lim, lim)   # (in, out)
    b = jax.random.uniform(kb, (fan_out,), dtype, -lim, lim)
    return w, b


def init_encoder_params(key, n_layers, d_model, d_ffn, dtype=jnp.float32):
    layers = []
    for lk in jax.random.split(key, n_layers):
        k = jax.random.split(lk, 6)
        wq, bq = _init_linear(k[0], d_model, d_model, dtype)
        wk, bk = _init_linear(k[1], d_model, d_model, dtype)
        wv, bv = _init_linear(k[2], d_model, d_model, dtype)
        wo, bo = _init_linear(k[3], d_model, d_model, dtype)
        w1, b1 = _init_linear(k[4], d_model, d_ffn, dtype)
        w2, b2 = _init_linear(k[5], d_ffn, d_model, dtype)
        layers.append(dict(
            ln1_g=jnp.ones((d_model,), dtype), ln1_b=jnp.zeros((d_model,), dtype),
            ln2_g=jnp.ones((d_model,), dtype), ln2_b=jnp.zeros((d_model,), dtype),
            wq=wq, bq=bq, wk=wk, bk=bk, wv=wv, bv=bv, wo=wo, bo=bo,
            w1=w1, b1=b1, w2=w2, b2=b2))
    return layers


def _layernorm_ref(x, g, b):
    mu = jnp.mean(x, axis=-1, keepdims=True)
    var = jnp.mean(jnp.square(x - mu), axis=-1, keepdims=True)
    return (x - mu) * jax.lax.rsqrt(var + _LN_EPS) * g + b


def _attention_ref(x, p, n_heads):
    bz, seq, d_model = x.shape
    d_k = d_model // n_heads
    q = (x @ p["wq"] + p["bq"]).reshape(bz, seq, n_heads, d_k).transpose(0, 2, 1, 3)
    k = (x @ p["wk"] + p["bk"]).reshape(bz, seq, n_heads, d_k).transpose(0, 2, 1, 3)
    v = (x @ p["wv"] + p["bv"]).reshape(bz, seq, n_heads, d_k).transpose(0, 2, 1, 3)
    s = jnp.einsum("bhqd,bhkd->bhqk", q, k) / math.sqrt(d_k)
    a = jax.nn.softmax(s, axis=-1)
    o = jnp.einsum("bhqk,bhkd->bhqd", a, v).transpose(0, 2, 1, 3).reshape(bz, seq, d_model)
    return o @ p["wo"] + p["bo"]


def _mlp_ref(x, p):
    h = jax.nn.gelu(x @ p["w1"] + p["b1"], approximate=False)
    return h @ p["w2"] + p["b2"]


def encoder_reference(x, layer_params, *, n_heads):
    for p in layer_params:
        x = x + _attention_ref(_layernorm_ref(x, p["ln1_g"], p["ln1_b"]), p, n_heads)
        x = x + _mlp_ref(_layernorm_ref(x, p["ln2_g"], p["ln2_b"]), p)
    return x


if __name__ == "__main__":
    # Small config consistent with the module: bz=2, seq=n_patches+1=8,
    # d_model=32, n_heads=4, d_ffn=64, n_layers=2 (dropout unused in eval).
    bz, seq, d_model, n_heads, d_ffn, n_layers = 2, 8, 32, 4, 64, 2

    key = jax.random.PRNGKey(0)
    kx, kp = jax.random.split(key)
    x = jax.random.normal(kx, (bz, seq, d_model), jnp.float32)
    layers = init_encoder_params(kp, n_layers, d_model, d_ffn)

    out = encoder_forward(x, layers, n_heads=n_heads)        # bf16 MXU operands
    out = jax.block_until_ready(out)

    ref = encoder_reference(x, layers, n_heads=n_heads)      # f32 PyTorch semantics
    assert out.shape == (bz, seq, d_model)
    # bf16 MXU inputs (f32 accumulation) deviate slightly from the f32 reference.
    assert jnp.allclose(out, ref, atol=3e-2, rtol=3e-2), (
        "mismatch vs reference: max abs err "
        f"{float(jnp.max(jnp.abs(out - ref)))}")

    print("KERNEL_OK")
</pallas_src>

<mosaic_0001>
module attributes {stable_mosaic.version = 11 : i64} {
  func.func @attn_block_kernel(%arg0: i32, %arg1: i32, %arg2: memref<1x8x32xf32, #tpu.memory_space<vmem>>, %arg3: memref<1x8x32xf32, #tpu.memory_space<vmem>>, %arg4: memref<1x32xf32, #tpu.memory_space<vmem>>, %arg5: memref<1x32xf32, #tpu.memory_space<vmem>>, %arg6: memref<32x32xbf16, #tpu.memory_space<vmem>>, %arg7: memref<1x32xf32, #tpu.memory_space<vmem>>, %arg8: memref<32x32xbf16, #tpu.memory_space<vmem>>, %arg9: memref<1x32xf32, #tpu.memory_space<vmem>>, %arg10: memref<32x32xbf16, #tpu.memory_space<vmem>>, %arg11: memref<1x32xf32, #tpu.memory_space<vmem>>, %arg12: memref<32x32xbf16, #tpu.memory_space<vmem>>, %arg13: memref<1x32xf32, #tpu.memory_space<vmem>>, %arg14: memref<1x8x32xf32, #tpu.memory_space<vmem>>) attributes {dimension_semantics = [#tpu.dimension_semantics<parallel>, #tpu.dimension_semantics<parallel>], iteration_bounds = array<i64: 2, 1>, scalar_prefetch = 0 : i64, scratch_operands = 0 : i64, tpu.core_type = #tpu.core_type<tc>, window_params = [{transform_indices = @transform_0, window_bounds = array<i64: 1, 8, 32>}, {transform_indices = @transform_1, window_bounds = array<i64: 1, 8, 32>}, {pipeline_mode = #tpu.pipeline_mode<synchronous>, transform_indices = @transform_2, window_bounds = array<i64: 1, 32>}, {pipeline_mode = #tpu.pipeline_mode<synchronous>, transform_indices = @transform_3, window_bounds = array<i64: 1, 32>}, {pipeline_mode = #tpu.pipeline_mode<synchronous>, transform_indices = @transform_4, window_bounds = array<i64: 32, 32>}, {pipeline_mode = #tpu.pipeline_mode<synchronous>, transform_indices = @transform_5, window_bounds = array<i64: 1, 32>}, {pipeline_mode = #tpu.pipeline_mode<synchronous>, transform_indices = @transform_6, window_bounds = array<i64: 32, 32>}, {pipeline_mode = #tpu.pipeline_mode<synchronous>, transform_indices = @transform_7, window_bounds = array<i64: 1, 32>}, {pipeline_mode = #tpu.pipeline_mode<synchronous>, transform_indices = @transform_8, window_bounds = array<i64: 32, 32>}, {pipeline_mode = #tpu.pipeline_mode<synchronous>, transform_indices = @transform_9, window_bounds = array<i64: 1, 32>}, {pipeline_mode = #tpu.pipeline_mode<synchronous>, transform_indices = @transform_10, window_bounds = array<i64: 32, 32>}, {pipeline_mode = #tpu.pipeline_mode<synchronous>, transform_indices = @transform_11, window_bounds = array<i64: 1, 32>}, {transform_indices = @transform_12, window_bounds = array<i64: 1, 8, 32>}]} {
    %c0 = arith.constant 0 : index
    %c0_0 = arith.constant 0 : index
    %c0_1 = arith.constant 0 : index
    %0 = vector.load %arg2[%c0, %c0_0, %c0_1] : memref<1x8x32xf32, #tpu.memory_space<vmem>>, vector<1x8x32xf32>
    %1 = vector.shape_cast %0 : vector<1x8x32xf32> to vector<8x32xf32>
    %c0_2 = arith.constant 0 : index
    %c0_3 = arith.constant 0 : index
    %c0_4 = arith.constant 0 : index
    %2 = vector.load %arg3[%c0_2, %c0_3, %c0_4] : memref<1x8x32xf32, #tpu.memory_space<vmem>>, vector<1x8x32xf32>
    %3 = vector.shape_cast %2 : vector<1x8x32xf32> to vector<8x32xf32>
    %c0_5 = arith.constant 0 : index
    %c0_6 = arith.constant 0 : index
    %4 = vector.load %arg4[%c0_5, %c0_6] : memref<1x32xf32, #tpu.memory_space<vmem>>, vector<1x32xf32>
    %c0_7 = arith.constant 0 : index
    %c0_8 = arith.constant 0 : index
    %5 = vector.load %arg5[%c0_7, %c0_8] : memref<1x32xf32, #tpu.memory_space<vmem>>, vector<1x32xf32>
    %cst = arith.constant dense<0.000000e+00> : vector<8xf32>
    %6 = vector.multi_reduction <add>, %1, %cst [1] : vector<8x32xf32> to vector<8xf32>
    %7 = vector.shape_cast %6 : vector<8xf32> to vector<8x1xf32>
    %cst_9 = arith.constant 3.200000e+01 : f32
    %8 = vector.broadcast %cst_9 : f32 to vector<8x1xf32>
    %9 = arith.divf %7, %8 : vector<8x1xf32>
    %10 = vector.broadcast %9 : vector<8x1xf32> to vector<8x32xf32>
    %11 = arith.subf %1, %10 : vector<8x32xf32>
    %12 = arith.mulf %11, %11 : vector<8x32xf32>
    %cst_10 = arith.constant dense<0.000000e+00> : vector<8xf32>
    %13 = vector.multi_reduction <add>, %12, %cst_10 [1] : vector<8x32xf32> to vector<8xf32>
    %14 = vector.shape_cast %13 : vector<8xf32> to vector<8x1xf32>
    %cst_11 = arith.constant 3.200000e+01 : f32
    %15 = vector.broadcast %cst_11 : f32 to vector<8x1xf32>
    %16 = arith.divf %14, %15 : vector<8x1xf32>
    %17 = vector.broadcast %9 : vector<8x1xf32> to vector<8x32xf32>
    %18 = arith.subf %1, %17 : vector<8x32xf32>
    %cst_12 = arith.constant 9.99999974E-6 : f32
    %19 = vector.broadcast %cst_12 : f32 to vector<8x1xf32>
    %20 = arith.addf %16, %19 : vector<8x1xf32>
    %21 = math.rsqrt %20 : vector<8x1xf32>
    %22 = vector.broadcast %21 : vector<8x1xf32> to vector<8x32xf32>
    %23 = arith.mulf %18, %22 : vector<8x32xf32>
    %24 = vector.broadcast %4 : vector<1x32xf32> to vector<8x32xf32>
    %25 = arith.mulf %23, %24 : vector<8x32xf32>
    %26 = vector.broadcast %5 : vector<1x32xf32> to vector<8x32xf32>
    %27 = arith.addf %25, %26 : vector<8x32xf32>
    %cst_13 = arith.constant dense<0.000000e+00> : vector<8xf32>
    %28 = vector.multi_reduction <add>, %3, %cst_13 [1] : vector<8x32xf32> to vector<8xf32>
    %29 = vector.shape_cast %28 : vector<8xf32> to vector<8x1xf32>
    %cst_14 = arith.constant 3.200000e+01 : f32
    %30 = vector.broadcast %cst_14 : f32 to vector<8x1xf32>
    %31 = arith.divf %29, %30 : vector<8x1xf32>
    %32 = vector.broadcast %31 : vector<8x1xf32> to vector<8x32xf32>
    %33 = arith.subf %3, %32 : vector<8x32xf32>
    %34 = arith.mulf %33, %33 : vector<8x32xf32>
    %cst_15 = arith.constant dense<0.000000e+00> : vector<8xf32>
    %35 = vector.multi_reduction <add>, %34, %cst_15 [1] : vector<8x32xf32> to vector<8xf32>
    %36 = vector.shape_cast %35 : vector<8xf32> to vector<8x1xf32>
    %cst_16 = arith.constant 3.200000e+01 : f32
    %37 = vector.broadcast %cst_16 : f32 to vector<8x1xf32>
    %38 = arith.divf %36, %37 : vector<8x1xf32>
    %39 = vector.broadcast %31 : vector<8x1xf32> to vector<8x32xf32>
    %40 = arith.subf %3, %39 : vector<8x32xf32>
    %cst_17 = arith.constant 9.99999974E-6 : f32
    %41 = vector.broadcast %cst_17 : f32 to vector<8x1xf32>
    %42 = arith.addf %38, %41 : vector<8x1xf32>
    %43 = math.rsqrt %42 : vector<8x1xf32>
    %44 = vector.broadcast %43 : vector<8x1xf32> to vector<8x32xf32>
    %45 = arith.mulf %40, %44 : vector<8x32xf32>
    %46 = vector.broadcast %4 : vector<1x32xf32> to vector<8x32xf32>
    %47 = arith.mulf %45, %46 : vector<8x32xf32>
    %48 = vector.broadcast %5 : vector<1x32xf32> to vector<8x32xf32>
    %49 = arith.addf %47, %48 : vector<8x32xf32>
    %50 = arith.truncf %27 : vector<8x32xf32> to vector<8x32xbf16>
    %c0_18 = arith.constant 0 : index
    %c0_19 = arith.constant 0 : index
    %51 = vector.load %arg6[%c0_18, %c0_19] : memref<32x32xbf16, #tpu.memory_space<vmem>>, vector<32x32xbf16>
    %cst_20 = arith.constant dense<0.000000e+00> : vector<8x32xf32>
    %52 = tpu.matmul %50, %51, %cst_20 {dimension_numbers = #tpu.dot_dimension_numbers<[1], [0], [0], [1], [0, 0, 1, 1], [], []>} : vector<8x32xbf16>, vector<32x32xbf16>, vector<8x32xf32> -> vector<8x32xf32>
    %c0_21 = arith.constant 0 : index
    %c0_22 = arith.constant 0 : index
    %53 = vector.load %arg7[%c0_21, %c0_22] : memref<1x32xf32, #tpu.memory_space<vmem>>, vector<1x32xf32>
    %54 = vector.broadcast %53 : vector<1x32xf32> to vector<8x32xf32>
    %55 = arith.addf %52, %54 : vector<8x32xf32>
    %56 = arith.truncf %49 : vector<8x32xf32> to vector<8x32xbf16>
    %c0_23 = arith.constant 0 : index
    %c0_24 = arith.constant 0 : index
    %57 = vector.load %arg8[%c0_23, %c0_24] : memref<32x32xbf16, #tpu.memory_space<vmem>>, vector<32x32xbf16>
    %cst_25 = arith.constant dense<0.000000e+00> : vector<8x32xf32>
    %58 = tpu.matmul %56, %57, %cst_25 {dimension_numbers = #tpu.dot_dimension_numbers<[1], [0], [0], [1], [0, 0, 1, 1], [], []>} : vector<8x32xbf16>, vector<32x32xbf16>, vector<8x32xf32> -> vector<8x32xf32>
    %c0_26 = arith.constant 0 : index
    %c0_27 = arith.constant 0 : index
    %59 = vector.load %arg9[%c0_26, %c0_27] : memref<1x32xf32, #tpu.memory_space<vmem>>, vector<1x32xf32>
    %60 = vector.broadcast %59 : vector<1x32xf32> to vector<8x32xf32>
    %61 = arith.addf %58, %60 : vector<8x32xf32>
    %62 = arith.truncf %49 : vector<8x32xf32> to vector<8x32xbf16>
    %c0_28 = arith.constant 0 : index
    %c0_29 = arith.constant 0 : index
    %63 = vector.load %arg10[%c0_28, %c0_29] : memref<32x32xbf16, #tpu.memory_space<vmem>>, vector<32x32xbf16>
    %cst_30 = arith.constant dense<0.000000e+00> : vector<8x32xf32>
    %64 = tpu.matmul %62, %63, %cst_30 {dimension_numbers = #tpu.dot_dimension_numbers<[1], [0], [0], [1], [0, 0, 1, 1], [], []>} : vector<8x32xbf16>, vector<32x32xbf16>, vector<8x32xf32> -> vector<8x32xf32>
    %c0_31 = arith.constant 0 : index
    %c0_32 = arith.constant 0 : index
    %65 = vector.load %arg11[%c0_31, %c0_32] : memref<1x32xf32, #tpu.memory_space<vmem>>, vector<1x32xf32>
    %66 = vector.broadcast %65 : vector<1x32xf32> to vector<8x32xf32>
    %67 = arith.addf %64, %66 : vector<8x32xf32>
    %68 = arith.truncf %55 : vector<8x32xf32> to vector<8x32xbf16>
    %69 = arith.truncf %61 : vector<8x32xf32> to vector<8x32xbf16>
    %70 = tpu.transpose %69, [1, 0] : vector<8x32xbf16> -> vector<32x8xbf16>
    %71 = arith.truncf %67 : vector<8x32xf32> to vector<8x32xbf16>
    %72 = vector.extract_strided_slice %68 {offsets = [0, 0], sizes = [8, 8], strides = [1, 1]} : vector<8x32xbf16> to vector<8x8xbf16>
    %73 = vector.extract_strided_slice %70 {offsets = [0, 0], sizes = [8, 8], strides = [1, 1]} : vector<32x8xbf16> to vector<8x8xbf16>
    %cst_33 = arith.constant dense<0.000000e+00> : vector<8x8xf32>
    %74 = tpu.matmul %72, %73, %cst_33 {dimension_numbers = #tpu.dot_dimension_numbers<[1], [0], [0], [1], [0, 0, 1, 1], [], []>} : vector<8x8xbf16>, vector<8x8xbf16>, vector<8x8xf32> -> vector<8x8xf32>
    %cst_34 = arith.constant 0.353553385 : f32
    %75 = vector.broadcast %cst_34 : f32 to vector<8x8xf32>
    %76 = arith.mulf %74, %75 : vector<8x8xf32>
    %cst_35 = arith.constant dense<0xFF800000> : vector<8xf32>
    %77 = vector.multi_reduction <maximumf>, %76, %cst_35 [1] : vector<8x8xf32> to vector<8xf32>
    %78 = vector.shape_cast %77 : vector<8xf32> to vector<8x1xf32>
    %79 = vector.broadcast %78 : vector<8x1xf32> to vector<8x8xf32>
    %80 = arith.subf %76, %79 : vector<8x8xf32>
    %81 = math.exp %80 : vector<8x8xf32>
    %cst_36 = arith.constant dense<0.000000e+00> : vector<8xf32>
    %82 = vector.multi_reduction <add>, %81, %cst_36 [1] : vector<8x8xf32> to vector<8xf32>
    %83 = vector.shape_cast %82 : vector<8xf32> to vector<8x1xf32>
    %84 = tpu.reciprocal %83 {approx = true} : vector<8x1xf32> -> vector<8x1xf32>
    %85 = vector.broadcast %84 : vector<8x1xf32> to vector<8x8xf32>
    %86 = arith.mulf %81, %85 : vector<8x8xf32>
    %87 = arith.truncf %86 : vector<8x8xf32> to vector<8x8xbf16>
    %88 = vector.extract_strided_slice %71 {offsets = [0, 0], sizes = [8, 8], strides = [1, 1]} : vector<8x32xbf16> to vector<8x8xbf16>
    %cst_37 = arith.constant dense<0.000000e+00> : vector<8x8xf32>
    %89 = tpu.matmul %87, %88, %cst_37 {dimension_numbers = #tpu.dot_dimension_numbers<[1], [0], [0], [1], [0, 0, 1, 1], [], []>} : vector<8x8xbf16>, vector<8x8xbf16>, vector<8x8xf32> -> vector<8x8xf32>
    %90 = vector.extract_strided_slice %68 {offsets = [0, 8], sizes = [8, 8], strides = [1, 1]} : vector<8x32xbf16> to vector<8x8xbf16>
    %91 = vector.extract_strided_slice %70 {offsets = [8, 0], sizes = [8, 8], strides = [1, 1]} : vector<32x8xbf16> to vector<8x8xbf16>
    %cst_38 = arith.constant dense<0.000000e+00> : vector<8x8xf32>
    %92 = tpu.matmul %90, %91, %cst_38 {dimension_numbers = #tpu.dot_dimension_numbers<[1], [0], [0], [1], [0, 0, 1, 1], [], []>} : vector<8x8xbf16>, vector<8x8xbf16>, vector<8x8xf32> -> vector<8x8xf32>
    %cst_39 = arith.constant 0.353553385 : f32
    %93 = vector.broadcast %cst_39 : f32 to vector<8x8xf32>
    %94 = arith.mulf %92, %93 : vector<8x8xf32>
    %cst_40 = arith.constant dense<0xFF800000> : vector<8xf32>
    %95 = vector.multi_reduction <maximumf>, %94, %cst_40 [1] : vector<8x8xf32> to vector<8xf32>
    %96 = vector.shape_cast %95 : vector<8xf32> to vector<8x1xf32>
    %97 = vector.broadcast %96 : vector<8x1xf32> to vector<8x8xf32>
    %98 = arith.subf %94, %97 : vector<8x8xf32>
    %99 = math.exp %98 : vector<8x8xf32>
    %cst_41 = arith.constant dense<0.000000e+00> : vector<8xf32>
    %100 = vector.multi_reduction <add>, %99, %cst_41 [1] : vector<8x8xf32> to vector<8xf32>
    %101 = vector.shape_cast %100 : vector<8xf32> to vector<8x1xf32>
    %102 = tpu.reciprocal %101 {approx = true} : vector<8x1xf32> -> vector<8x1xf32>
    %103 = vector.broadcast %102 : vector<8x1xf32> to vector<8x8xf32>
    %104 = arith.mulf %99, %103 : vector<8x8xf32>
    %105 = arith.truncf %104 : vector<8x8xf32> to vector<8x8xbf16>
    %106 = vector.extract_strided_slice %71 {offsets = [0, 8], sizes = [8, 8], strides = [1, 1]} : vector<8x32xbf16> to vector<8x8xbf16>
    %cst_42 = arith.constant dense<0.000000e+00> : vector<8x8xf32>
    %107 = tpu.matmul %105, %106, %cst_42 {dimension_numbers = #tpu.dot_dimension_numbers<[1], [0], [0], [1], [0, 0, 1, 1], [], []>} : vector<8x8xbf16>, vector<8x8xbf16>, vector<8x8xf32> -> vector<8x8xf32>
    %108 = vector.extract_strided_slice %68 {offsets = [0, 16], sizes = [8, 8], strides = [1, 1]} : vector<8x32xbf16> to vector<8x8xbf16>
    %109 = vector.extract_strided_slice %70 {offsets = [16, 0], sizes = [8, 8], strides = [1, 1]} : vector<32x8xbf16> to vector<8x8xbf16>
    %cst_43 = arith.constant dense<0.000000e+00> : vector<8x8xf32>
    %110 = tpu.matmul %108, %109, %cst_43 {dimension_numbers = #tpu.dot_dimension_numbers<[1], [0], [0], [1], [0, 0, 1, 1], [], []>} : vector<8x8xbf16>, vector<8x8xbf16>, vector<8x8xf32> -> vector<8x8xf32>
    %cst_44 = arith.constant 0.353553385 : f32
    %111 = vector.broadcast %cst_44 : f32 to vector<8x8xf32>
    %112 = arith.mulf %110, %111 : vector<8x8xf32>
    %cst_45 = arith.constant dense<0xFF800000> : vector<8xf32>
    %113 = vector.multi_reduction <maximumf>, %112, %cst_45 [1] : vector<8x8xf32> to vector<8xf32>
    %114 = vector.shape_cast %113 : vector<8xf32> to vector<8x1xf32>
    %115 = vector.broadcast %114 : vector<8x1xf32> to vector<8x8xf32>
    %116 = arith.subf %112, %115 : vector<8x8xf32>
    %117 = math.exp %116 : vector<8x8xf32>
    %cst_46 = arith.constant dense<0.000000e+00> : vector<8xf32>
    %118 = vector.multi_reduction <add>, %117, %cst_46 [1] : vector<8x8xf32> to vector<8xf32>
    %119 = vector.shape_cast %118 : vector<8xf32> to vector<8x1xf32>
    %120 = tpu.reciprocal %119 {approx = true} : vector<8x1xf32> -> vector<8x1xf32>
    %121 = vector.broadcast %120 : vector<8x1xf32> to vector<8x8xf32>
    %122 = arith.mulf %117, %121 : vector<8x8xf32>
    %123 = arith.truncf %122 : vector<8x8xf32> to vector<8x8xbf16>
    %124 = vector.extract_strided_slice %71 {offsets = [0, 16], sizes = [8, 8], strides = [1, 1]} : vector<8x32xbf16> to vector<8x8xbf16>
    %cst_47 = arith.constant dense<0.000000e+00> : vector<8x8xf32>
    %125 = tpu.matmul %123, %124, %cst_47 {dimension_numbers = #tpu.dot_dimension_numbers<[1], [0], [0], [1], [0, 0, 1, 1], [], []>} : vector<8x8xbf16>, vector<8x8xbf16>, vector<8x8xf32> -> vector<8x8xf32>
    %126 = vector.extract_strided_slice %68 {offsets = [0, 24], sizes = [8, 8], strides = [1, 1]} : vector<8x32xbf16> to vector<8x8xbf16>
    %127 = vector.extract_strided_slice %70 {offsets = [24, 0], sizes = [8, 8], strides = [1, 1]} : vector<32x8xbf16> to vector<8x8xbf16>
    %cst_48 = arith.constant dense<0.000000e+00> : vector<8x8xf32>
    %128 = tpu.matmul %126, %127, %cst_48 {dimension_numbers = #tpu.dot_dimension_numbers<[1], [0], [0], [1], [0, 0, 1, 1], [], []>} : vector<8x8xbf16>, vector<8x8xbf16>, vector<8x8xf32> -> vector<8x8xf32>
    %cst_49 = arith.constant 0.353553385 : f32
    %129 = vector.broadcast %cst_49 : f32 to vector<8x8xf32>
    %130 = arith.mulf %128, %129 : vector<8x8xf32>
    %cst_50 = arith.constant dense<0xFF800000> : vector<8xf32>
    %131 = vector.multi_reduction <maximumf>, %130, %cst_50 [1] : vector<8x8xf32> to vector<8xf32>
    %132 = vector.shape_cast %131 : vector<8xf32> to vector<8x1xf32>
    %133 = vector.broadcast %132 : vector<8x1xf32> to vector<8x8xf32>
    %134 = arith.subf %130, %133 : vector<8x8xf32>
    %135 = math.exp %134 : vector<8x8xf32>
    %cst_51 = arith.constant dense<0.000000e+00> : vector<8xf32>
    %136 = vector.multi_reduction <add>, %135, %cst_51 [1] : vector<8x8xf32> to vector<8xf32>
    %137 = vector.shape_cast %136 : vector<8xf32> to vector<8x1xf32>
    %138 = tpu.reciprocal %137 {approx = true} : vector<8x1xf32> -> vector<8x1xf32>
    %139 = vector.broadcast %138 : vector<8x1xf32> to vector<8x8xf32>
    %140 = arith.mulf %135, %139 : vector<8x8xf32>
    %141 = arith.truncf %140 : vector<8x8xf32> to vector<8x8xbf16>
    %142 = vector.extract_strided_slice %71 {offsets = [0, 24], sizes = [8, 8], strides = [1, 1]} : vector<8x32xbf16> to vector<8x8xbf16>
    %cst_52 = arith.constant dense<0.000000e+00> : vector<8x8xf32>
    %143 = tpu.matmul %141, %142, %cst_52 {dimension_numbers = #tpu.dot_dimension_numbers<[1], [0], [0], [1], [0, 0, 1, 1], [], []>} : vector<8x8xbf16>, vector<8x8xbf16>, vector<8x8xf32> -> vector<8x8xf32>
    %144 = tpu.concatenate %89, %107, %125, %143 in 1 : vector<8x8xf32>, vector<8x8xf32>, vector<8x8xf32>, vector<8x8xf32> -> vector<8x32xf32>
    %145 = arith.truncf %144 : vector<8x32xf32> to vector<8x32xbf16>
    %c0_53 = arith.constant 0 : index
    %c0_54 = arith.constant 0 : index
    %146 = vector.load %arg12[%c0_53, %c0_54] : memref<32x32xbf16, #tpu.memory_space<vmem>>, vector<32x32xbf16>
    %cst_55 = arith.constant dense<0.000000e+00> : vector<8x32xf32>
    %147 = tpu.matmul %145, %146, %cst_55 {dimension_numbers = #tpu.dot_dimension_numbers<[1], [0], [0], [1], [0, 0, 1, 1], [], []>} : vector<8x32xbf16>, vector<32x32xbf16>, vector<8x32xf32> -> vector<8x32xf32>
    %c0_56 = arith.constant 0 : index
    %c0_57 = arith.constant 0 : index
    %148 = vector.load %arg13[%c0_56, %c0_57] : memref<1x32xf32, #tpu.memory_space<vmem>>, vector<1x32xf32>
    %149 = vector.broadcast %148 : vector<1x32xf32> to vector<8x32xf32>
    %150 = arith.addf %147, %149 : vector<8x32xf32>
    %151 = arith.addf %1, %150 : vector<8x32xf32>
    %c0_58 = arith.constant 0 : index
    %c0_59 = arith.constant 0 : index
    %c0_60 = arith.constant 0 : index
    %152 = vector.load %arg14[%c0_58, %c0_59, %c0_60] : memref<1x8x32xf32, #tpu.memory_space<vmem>>, vector<1x8x32xf32>
    %153 = vector.shape_cast %152 : vector<1x8x32xf32> to vector<8x32xf32>
    %154 = vector.shape_cast %151 : vector<8x32xf32> to vector<1x8x32xf32>
    tpu.vector_store %arg14[%c0_58, %c0_59, %c0_60], %154 {strides = array<i32>} : memref<1x8x32xf32, #tpu.memory_space<vmem>>, vector<1x8x32xf32>,
    return
  }
  func.func @transform_0(%arg0: i32, %arg1: i32) -> (i32, i32, i32) {
    %c0_i32 = arith.constant 0 : i32
    %c0_i32_0 = arith.constant 0 : i32
    return %arg0, %arg1, %c0_i32 : i32, i32, i32
  }
  func.func @transform_1(%arg0: i32, %arg1: i32) -> (i32, i32, i32) {
    %c0_i32 = arith.constant 0 : i32
    %c0_i32_0 = arith.constant 0 : i32
    %c0_i32_1 = arith.constant 0 : i32
    return %arg0, %c0_i32, %c0_i32_0 : i32, i32, i32
  }
  func.func @transform_2(%arg0: i32, %arg1: i32) -> (i32, i32) {
    %c0_i32 = arith.constant 0 : i32
    %c0_i32_0 = arith.constant 0 : i32
    %c0_i32_1 = arith.constant 0 : i32
    return %c0_i32, %c0_i32_0 : i32, i32
  }
  func.func @transform_3(%arg0: i32, %arg1: i32) -> (i32, i32) {
    %c0_i32 = arith.constant 0 : i32
    %c0_i32_0 = arith.constant 0 : i32
    %c0_i32_1 = arith.constant 0 : i32
    return %c0_i32, %c0_i32_0 : i32, i32
  }
  func.func @transform_4(%arg0: i32, %arg1: i32) -> (i32, i32) {
    %c0_i32 = arith.constant 0 : i32
    %c0_i32_0 = arith.constant 0 : i32
    %c0_i32_1 = arith.constant 0 : i32
    return %c0_i32, %c0_i32_0 : i32, i32
  }
  func.func @transform_5(%arg0: i32, %arg1: i32) -> (i32, i32) {
    %c0_i32 = arith.constant 0 : i32
    %c0_i32_0 = arith.constant 0 : i32
    %c0_i32_1 = arith.constant 0 : i32
    return %c0_i32, %c0_i32_0 : i32, i32
  }
  func.func @transform_6(%arg0: i32, %arg1: i32) -> (i32, i32) {
    %c0_i32 = arith.constant 0 : i32
    %c0_i32_0 = arith.constant 0 : i32
    %c0_i32_1 = arith.constant 0 : i32
    return %c0_i32, %c0_i32_0 : i32, i32
  }
  func.func @transform_7(%arg0: i32, %arg1: i32) -> (i32, i32) {
    %c0_i32 = arith.constant 0 : i32
    %c0_i32_0 = arith.constant 0 : i32
    %c0_i32_1 = arith.constant 0 : i32
    return %c0_i32, %c0_i32_0 : i32, i32
  }
  func.func @transform_8(%arg0: i32, %arg1: i32) -> (i32, i32) {
    %c0_i32 = arith.constant 0 : i32
    %c0_i32_0 = arith.constant 0 : i32
    %c0_i32_1 = arith.constant 0 : i32
    return %c0_i32, %c0_i32_0 : i32, i32
  }
  func.func @transform_9(%arg0: i32, %arg1: i32) -> (i32, i32) {
    %c0_i32 = arith.constant 0 : i32
    %c0_i32_0 = arith.constant 0 : i32
    %c0_i32_1 = arith.constant 0 : i32
    return %c0_i32, %c0_i32_0 : i32, i32
  }
  func.func @transform_10(%arg0: i32, %arg1: i32) -> (i32, i32) {
    %c0_i32 = arith.constant 0 : i32
    %c0_i32_0 = arith.constant 0 : i32
    %c0_i32_1 = arith.constant 0 : i32
    return %c0_i32, %c0_i32_0 : i32, i32
  }
  func.func @transform_11(%arg0: i32, %arg1: i32) -> (i32, i32) {
    %c0_i32 = arith.constant 0 : i32
    %c0_i32_0 = arith.constant 0 : i32
    %c0_i32_1 = arith.constant 0 : i32
    return %c0_i32, %c0_i32_0 : i32, i32
  }
  func.func @transform_12(%arg0: i32, %arg1: i32) -> (i32, i32, i32) {
    %c0_i32 = arith.constant 0 : i32
    %c0_i32_0 = arith.constant 0 : i32
    return %arg0, %arg1, %c0_i32 : i32, i32, i32
  }
}

</mosaic_0001>

<llo_original>
// kernel: tpu_custom_call.1
$region0: #{tpu_custom_call.1}
  #allocation0 [shape = 'u32[]', space=smem, size = 0x4, offset = 0x4, fixed_abs, tag = 'smem constant byte address 0x4 - core index']
  #allocation1 [shape = 'u32[144,128]{1,0:T(1,128)}', space=vmem, size = 0x12000, scoped, tag = 'internal scratch']
  %s0 = inlined_call_operand.hbm [shape: f32[2,8,32], index: 0, kind: input, shape index: {}]
  %s1 = inlined_call_operand.hbm [shape: f32[2,8,32], index: 1, kind: input, shape index: {}]
  %s2 = inlined_call_operand.vmem [shape: f32[1,32], index: 2, kind: input, shape index: {}]
  %s3 = inlined_call_operand.vmem [shape: f32[1,32], index: 3, kind: input, shape index: {}]
  %s4 = inlined_call_operand.hbm [shape: bf16[32,32], index: 4, kind: input, shape index: {}]
  %s5 = inlined_call_operand.hbm [shape: f32[1,32], index: 5, kind: input, shape index: {}]
  %s6 = inlined_call_operand.hbm [shape: bf16[32,32], index: 6, kind: input, shape index: {}]
  %s7 = inlined_call_operand.hbm [shape: f32[1,32], index: 7, kind: input, shape index: {}]
  %s8 = inlined_call_operand.hbm [shape: bf16[32,32], index: 8, kind: input, shape index: {}]
  %s9 = inlined_call_operand.hbm [shape: f32[1,32], index: 9, kind: input, shape index: {}]
  %s10 = inlined_call_operand.vmem [shape: bf16[32,32], index: 10, kind: input, shape index: {}]
  %s11 = inlined_call_operand.vmem [shape: f32[1,32], index: 11, kind: input, shape index: {}]
  %s12 = inlined_call_operand.hbm [shape: f32[2,8,32], index: 12, kind: output, shape index: {}]
  %s13 = sld [smem:[#allocation0]]
  $region113: #{tpu_custom_call.1} parent=0
    _
  %s15 = ssub.s32 1, %s13
  %s16 = scalar_select 0, %s15, %s13
  $region1: #{tpu_custom_call.1} parent=0
    #allocation2 [shape = 'u8[8192]{0}', space=vmem, size = 0x2000, scoped, tag = 'input window, operand 0']
    #allocation3 [shape = 's32[2]{0}', space=sflag, size = 0x8, scoped, tag = 'scoped memory for tpu_custom_call.1']
    #allocation4 [shape = 's32[2]{0}', space=sflag, size = 0x8, scoped, tag = 'scoped memory for tpu_custom_call.1']
    #allocation5 [shape = 'u8[8192]{0}', space=vmem, size = 0x2000, scoped, tag = 'input window, operand 1']
    #allocation6 [shape = 's32[2]{0}', space=sflag, size = 0x8, scoped, tag = 'scoped memory for tpu_custom_call.1']
    #allocation7 [shape = 'u8[8192]{0}', space=vmem, size = 0x2000, scoped, tag = 'input window, operand 4, single buffered']
    #allocation8 [shape = 'u8[512]{0}', space=vmem, size = 0x400, scoped, tag = 'input window, operand 5, single buffered']
    #allocation9 [shape = 's32[1]{0}', space=sflag, size = 0x4, scoped, tag = 'scoped memory for tpu_custom_call.1']
    #allocation10 [shape = 'u8[8192]{0}', space=vmem, size = 0x2000, scoped, tag = 'input window, operand 6, single buffered']
    #allocation11 [shape = 'u8[512]{0}', space=vmem, size = 0x400, scoped, tag = 'input window, operand 7, single buffered']
    #allocation12 [shape = 's32[1]{0}', space=sflag, size = 0x4, scoped, tag = 'scoped memory for tpu_custom_call.1']
    #allocation13 [shape = 'u8[8192]{0}', space=vmem, size = 0x2000, scoped, tag = 'input window, operand 8, single buffered']
    #allocation14 [shape = 'u8[512]{0}', space=vmem, size = 0x400, scoped, tag = 'input window, operand 9, single buffered']
    #allocation15 [shape = 's32[1]{0}', space=sflag, size = 0x4, scoped, tag = 'scoped memory for tpu_custom_call.1']
    #allocation16 [shape = 'u8[8192]{0}', space=vmem, size = 0x2000, scoped, tag = 'output window, operand 0']
    %17 = vsyncpa [#allocation3], 0
    %s18 = scalar_lea.sflag [#allocation3], 1
    %19 = vsyncpa %s18, 0
    %20 = vsyncpa [#allocation6], 0
    %s21 = scalar_lea.sflag [#allocation6], 1
    %22 = vsyncpa %s21, 0
    %23 = vsyncpa [#allocation9], 0
    %24 = vsyncpa [#allocation12], 0
    %25 = vsyncpa [#allocation15], 0
    %26 = vsyncpa [#allocation4], 0
    %s27 = scalar_lea.sflag [#allocation4], 1
    %28 = vsyncpa %s27, 0
    loop: start=0, step=1, limit=4
    $region2: #{tpu_custom_call.1} parent=1 // loop_pre_header
      _
    $region3: #{tpu_custom_call.1} parent=1 // loop_header
      %s30 = sphi 0, %s34
      %p31 = scmp.ge.s32.totalorder %s30, 4
      %s37 = sphi 0, %s49
      %s38 = sphi 0, %s45
      %s39 = sphi 0, %s37
      %s40 = sphi 0, %s38
      %s41 = sphi 0, %s39
      %s42 = sphi 0, %s40
      %s54 = sphi 0, %s56
      %s57 = sphi 0, %s54
      %s58 = sphi 0, %s57
      %s74 = sphi 0, %s58
      %s80 = sphi 0, %s82
      %s83 = sphi 0, %s80
      %s84 = sphi 0, %s83
      %s100 = sphi 0, %s84
      %s104 = sphi 0, %s104
      %s106 = sphi 0, %s104
      %s107 = sphi 0, %s106
      %s121 = sphi 0, %s107
      %s125 = sphi 0, %s125
      %s127 = sphi 0, %s125
      %s128 = sphi 0, %s127
      %s142 = sphi 0, %s128
      %s146 = sphi 0, %s146
      %s148 = sphi 0, %s146
      %s149 = sphi 0, %s148
      %s163 = sphi 0, %s149
      %s167 = sphi 0, %s167
      %s169 = sphi 0, %s167
      %s170 = sphi 0, %s169
      %s184 = sphi 0, %s170
      %s188 = sphi 0, %s188
      %s190 = sphi 0, %s188
      %s191 = sphi 0, %s190
      %s205 = sphi 0, %s191
      %s209 = sphi 0, %s209
      %s211 = sphi 0, %s209
      %s212 = sphi 0, %s211
      %s226 = sphi 0, %s212
      %s230 = sphi 0, %s230
      %s232 = sphi 0, %s230
      %s233 = sphi 0, %s232
      %s247 = sphi 0, %s233
      %s251 = sphi 0, %s251
      %s253 = sphi 0, %s251
      %s254 = sphi 0, %s253
      %s268 = sphi 0, %s254
      %s272 = sphi 0, %s272
      %s274 = sphi 0, %s272
      %s275 = sphi 0, %s274
      %s289 = sphi 0, %s275
      %s293 = sphi 0, %s293
      %s295 = sphi 0, %s293
      %s296 = sphi 0, %s295
      %s310 = sphi 0, %s296
      %s318 = sphi 0, %s320
      %s321 = sphi 0, %s318
      %s322 = sphi 0, %s321
      %s338 = sphi 0, %s322
    $region4: #{tpu_custom_call.1} parent=1 // loop_header_branch
      %33 = sbr.rel (%p31) target = $region8
    $region5: #{tpu_custom_call.1} parent=1 // loop_body
      %s35 = ssub.s32 %s30, 1
      %s36 = ssub.s32 %s30, 2
      %s43 = sadd.s32 1, %s38
      %p44 = scmp.ge.s32.totalorder %s43, 1
      %s45 = scalar_select %p44, 0, %s43
      %s46 = sadd.s32 1, %s37
      %s47 = scalar_select %p44, %s46, %s37
      %p48 = scmp.ge.s32.totalorder %s47, 2
      %s49 = scalar_select %p48, 0, %s47
      %s50 = ssub.s32 %s37, %s49
      %s51 = ssub.s32 %s38, %s45
      %s52 = sor.u32 %s50, %s51
      %p53 = scmp.eq.s32.totalorder %s52, 0
      %s55 = sadd.s32 %s54, 1
      %s56 = scalar_select %p53, %s54, %s55
      %p59 = pneg %p53
      %p60 = scmp.eq.s32.totalorder %s30, 1
      %p61 = por %p59, %p60
      %p62 = scmp.ne.s32.totalorder %s54, %s57
      %p63 = scmp.eq.s32.totalorder %s30, 0
      %p64 = por %p62, %p63
      %p65 = scmp.ne.s32.totalorder %s54, %s57
      %p66 = scmp.eq.s32.totalorder %s35, 1
      %p67 = por %p65, %p66
      %p68 = scmp.ne.s32.totalorder %s57, %s58
      %p69 = scmp.eq.s32.totalorder %s35, 0
      %p70 = por %p68, %p69
      %p71 = scmp.ne.s32.totalorder %s57, %s58
      %p72 = scmp.eq.s32.totalorder %s36, 1
      %p73 = por %p71, %p72
      %p75 = scmp.ne.s32.totalorder %s58, %s74
      %p76 = scmp.eq.s32.totalorder %s36, 0
      %p77 = por %p75, %p76
      %s78 = ssub.s32 %s37, %s49
      %p79 = scmp.eq.s32.totalorder %s78, 0
      %s81 = sadd.s32 %s80, 1
      %s82 = scalar_select %p79, %s80, %s81
      %p85 = pneg %p79
      %p86 = scmp.eq.s32.totalorder %s30, 1
      %p87 = por %p85, %p86
      %p88 = scmp.ne.s32.totalorder %s80, %s83
      %p89 = scmp.eq.s32.totalorder %s30, 0
      %p90 = por %p88, %p89
      %p91 = scmp.ne.s32.totalorder %s80, %s83
      %p92 = scmp.eq.s32.totalorder %s35, 1
      %p93 = por %p91, %p92
      %p94 = scmp.ne.s32.totalorder %s83, %s84
      %p95 = scmp.eq.s32.totalorder %s35, 0
      %p96 = por %p94, %p95
      %p97 = scmp.ne.s32.totalorder %s83, %s84
      %p98 = scmp.eq.s32.totalorder %s36, 1
      %p99 = por %p97, %p98
      %p101 = scmp.ne.s32.totalorder %s84, %s100
      %p102 = scmp.eq.s32.totalorder %s36, 0
      %p103 = por %p101, %p102
      %s105 = sadd.s32 %s104, 1
      %p108 = scmp.eq.s32.totalorder %s30, 1
      %p109 = scmp.ne.s32.totalorder %s104, %s106
      %p110 = scmp.eq.s32.totalorder %s30, 0
      %p111 = por %p109, %p110
      %p112 = scmp.ne.s32.totalorder %s104, %s106
      %p113 = scmp.eq.s32.totalorder %s35, 1
      %p114 = por %p112, %p113
      %p115 = scmp.ne.s32.totalorder %s106, %s107
      %p116 = scmp.eq.s32.totalorder %s35, 0
      %p117 = por %p115, %p116
      %p118 = scmp.ne.s32.totalorder %s106, %s107
      %p119 = scmp.eq.s32.totalorder %s36, 1
      %p120 = por %p118, %p119
      %p122 = scmp.ne.s32.totalorder %s107, %s121
      %p123 = scmp.eq.s32.totalorder %s36, 0
      %p124 = por %p122, %p123
      %s126 = sadd.s32 %s125, 1
      %p129 = scmp.eq.s32.totalorder %s30, 1
      %p130 = scmp.ne.s32.totalorder %s125, %s127
      %p131 = scmp.eq.s32.totalorder %s30, 0
      %p132 = por %p130, %p131
      %p133 = scmp.ne.s32.totalorder %s125, %s127
      %p134 = scmp.eq.s32.totalorder %s35, 1
      %p135 = por %p133, %p134
      %p136 = scmp.ne.s32.totalorder %s127, %s128
      %p137 = scmp.eq.s32.totalorder %s35, 0
      %p138 = por %p136, %p137
      %p139 = scmp.ne.s32.totalorder %s127, %s128
      %p140 = scmp.eq.s32.totalorder %s36, 1
      %p141 = por %p139, %p140
      %p143 = scmp.ne.s32.totalorder %s128, %s142
      %p144 = scmp.eq.s32.totalorder %s36, 0
      %p145 = por %p143, %p144
      %s147 = sadd.s32 %s146, 1
      %p150 = scmp.eq.s32.totalorder %s30, 1
      %p151 = scmp.ne.s32.totalorder %s146, %s148
      %p152 = scmp.eq.s32.totalorder %s30, 0
      %p153 = por %p151, %p152
      %p154 = scmp.ne.s32.totalorder %s146, %s148
      %p155 = scmp.eq.s32.totalorder %s35, 1
      %p156 = por %p154, %p155
      %p157 = scmp.ne.s32.totalorder %s148, %s149
      %p158 = scmp.eq.s32.totalorder %s35, 0
      %p159 = por %p157, %p158
      %p160 = scmp.ne.s32.totalorder %s148, %s149
      %p161 = scmp.eq.s32.totalorder %s36, 1
      %p162 = por %p160, %p161
      %p164 = scmp.ne.s32.totalorder %s149, %s163
      %p165 = scmp.eq.s32.totalorder %s36, 0
      %p166 = por %p164, %p165
      %s168 = sadd.s32 %s167, 1
      %p171 = scmp.eq.s32.totalorder %s30, 1
      %p172 = scmp.ne.s32.totalorder %s167, %s169
      %p173 = scmp.eq.s32.totalorder %s30, 0
      %p174 = por %p172, %p173
      %p175 = scmp.ne.s32.totalorder %s167, %s169
      %p176 = scmp.eq.s32.totalorder %s35, 1
      %p177 = por %p175, %p176
      %p178 = scmp.ne.s32.totalorder %s169, %s170
      %p179 = scmp.eq.s32.totalorder %s35, 0
      %p180 = por %p178, %p179
      %p181 = scmp.ne.s32.totalorder %s169, %s170
      %p182 = scmp.eq.s32.totalorder %s36, 1
      %p183 = por %p181, %p182
      %p185 = scmp.ne.s32.totalorder %s170, %s184
      %p186 = scmp.eq.s32.totalorder %s36, 0
      %p187 = por %p185, %p186
      %s189 = sadd.s32 %s188, 1
      %p192 = scmp.eq.s32.totalorder %s30, 1
      %p193 = scmp.ne.s32.totalorder %s188, %s190
      %p194 = scmp.eq.s32.totalorder %s30, 0
      %p195 = por %p193, %p194
      %p196 = scmp.ne.s32.totalorder %s188, %s190
      %p197 = scmp.eq.s32.totalorder %s35, 1
      %p198 = por %p196, %p197
      %p199 = scmp.ne.s32.totalorder %s190, %s191
      %p200 = scmp.eq.s32.totalorder %s35, 0
      %p201 = por %p199, %p200
      %p202 = scmp.ne.s32.totalorder %s190, %s191
      %p203 = scmp.eq.s32.totalorder %s36, 1
      %p204 = por %p202, %p203
      %p206 = scmp.ne.s32.totalorder %s191, %s205
      %p207 = scmp.eq.s32.totalorder %s36, 0
      %p208 = por %p206, %p207
      %s210 = sadd.s32 %s209, 1
      %p213 = scmp.eq.s32.totalorder %s30, 1
      %p214 = scmp.ne.s32.totalorder %s209, %s211
      %p215 = scmp.eq.s32.totalorder %s30, 0
      %p216 = por %p214, %p215
      %p217 = scmp.ne.s32.totalorder %s209, %s211
      %p218 = scmp.eq.s32.totalorder %s35, 1
      %p219 = por %p217, %p218
      %p220 = scmp.ne.s32.totalorder %s211, %s212
      %p221 = scmp.eq.s32.totalorder %s35, 0
      %p222 = por %p220, %p221
      %p223 = scmp.ne.s32.totalorder %s211, %s212
      %p224 = scmp.eq.s32.totalorder %s36, 1
      %p225 = por %p223, %p224
      %p227 = scmp.ne.s32.totalorder %s212, %s226
      %p228 = scmp.eq.s32.totalorder %s36, 0
      %p229 = por %p227, %p228
      %s231 = sadd.s32 %s230, 1
      %p234 = scmp.eq.s32.totalorder %s30, 1
      %p235 = scmp.ne.s32.totalorder %s230, %s232
      %p236 = scmp.eq.s32.totalorder %s30, 0
      %p237 = por %p235, %p236
      %p238 = scmp.ne.s32.totalorder %s230, %s232
      %p239 = scmp.eq.s32.totalorder %s35, 1
      %p240 = por %p238, %p239
      %p241 = scmp.ne.s32.totalorder %s232, %s233
      %p242 = scmp.eq.s32.totalorder %s35, 0
      %p243 = por %p241, %p242
      %p244 = scmp.ne.s32.totalorder %s232, %s233
      %p245 = scmp.eq.s32.totalorder %s36, 1
      %p246 = por %p244, %p245
      %p248 = scmp.ne.s32.totalorder %s233, %s247
      %p249 = scmp.eq.s32.totalorder %s36, 0
      %p250 = por %p248, %p249
      %s252 = sadd.s32 %s251, 1
      %p255 = scmp.eq.s32.totalorder %s30, 1
      %p256 = scmp.ne.s32.totalorder %s251, %s253
      %p257 = scmp.eq.s32.totalorder %s30, 0
      %p258 = por %p256, %p257
      %p259 = scmp.ne.s32.totalorder %s251, %s253
      %p260 = scmp.eq.s32.totalorder %s35, 1
      %p261 = por %p259, %p260
      %p262 = scmp.ne.s32.totalorder %s253, %s254
      %p263 = scmp.eq.s32.totalorder %s35, 0
      %p264 = por %p262, %p263
      %p265 = scmp.ne.s32.totalorder %s253, %s254
      %p266 = scmp.eq.s32.totalorder %s36, 1
      %p267 = por %p265, %p266
      %p269 = scmp.ne.s32.totalorder %s254, %s268
      %p270 = scmp.eq.s32.totalorder %s36, 0
      %p271 = por %p269, %p270
      %s273 = sadd.s32 %s272, 1
      %p276 = scmp.eq.s32.totalorder %s30, 1
      %p277 = scmp.ne.s32.totalorder %s272, %s274
      %p278 = scmp.eq.s32.totalorder %s30, 0
      %p279 = por %p277, %p278
      %p280 = scmp.ne.s32.totalorder %s272, %s274
      %p281 = scmp.eq.s32.totalorder %s35, 1
      %p282 = por %p280, %p281
      %p283 = scmp.ne.s32.totalorder %s274, %s275
      %p284 = scmp.eq.s32.totalorder %s35, 0
      %p285 = por %p283, %p284
      %p286 = scmp.ne.s32.totalorder %s274, %s275
      %p287 = scmp.eq.s32.totalorder %s36, 1
      %p288 = por %p286, %p287
      %p290 = scmp.ne.s32.totalorder %s275, %s289
      %p291 = scmp.eq.s32.totalorder %s36, 0
      %p292 = por %p290, %p291
      %s294 = sadd.s32 %s293, 1
      %p297 = scmp.eq.s32.totalorder %s30, 1
      %p298 = scmp.ne.s32.totalorder %s293, %s295
      %p299 = scmp.eq.s32.totalorder %s30, 0
      %p300 = por %p298, %p299
      %p301 = scmp.ne.s32.totalorder %s293, %s295
      %p302 = scmp.eq.s32.totalorder %s35, 1
      %p303 = por %p301, %p302
      %p304 = scmp.ne.s32.totalorder %s295, %s296
      %p305 = scmp.eq.s32.totalorder %s35, 0
      %p306 = por %p304, %p305
      %p307 = scmp.ne.s32.totalorder %s295, %s296
      %p308 = scmp.eq.s32.totalorder %s36, 1
      %p309 = por %p307, %p308
      %p311 = scmp.ne.s32.totalorder %s296, %s310
      %p312 = scmp.eq.s32.totalorder %s36, 0
      %p313 = por %p311, %p312
      %s314 = ssub.s32 %s37, %s49
      %s315 = ssub.s32 %s38, %s45
      %s316 = sor.u32 %s314, %s315
      %p317 = scmp.eq.s32.totalorder %s316, 0
      %s319 = sadd.s32 %s318, 1
      %s320 = scalar_select %p317, %s318, %s319
      %p323 = pneg %p317
      %p324 = scmp.eq.s32.totalorder %s30, 1
      %p325 = por %p323, %p324
      %p326 = scmp.ne.s32.totalorder %s318, %s321
      %p327 = scmp.eq.s32.totalorder %s30, 0
      %p328 = por %p326, %p327
      %p329 = scmp.ne.s32.totalorder %s318, %s321
      %p330 = scmp.eq.s32.totalorder %s35, 1
      %p331 = por %p329, %p330
      %p332 = scmp.ne.s32.totalorder %s321, %s322
      %p333 = scmp.eq.s32.totalorder %s35, 0
      %p334 = por %p332, %p333
      %p335 = scmp.ne.s32.totalorder %s321, %s322
      %p336 = scmp.eq.s32.totalorder %s36, 1
      %p337 = por %p335, %p336
      %p339 = scmp.ne.s32.totalorder %s322, %s338
      %p340 = scmp.eq.s32.totalorder %s36, 0
      %p341 = por %p339, %p340
      %p342 = scmp.le.s32.totalorder 1, %s30
      %p343 = scmp.lt.s32.totalorder %s30, 3
      %p344 = pnand %p342, %p343
      %p345 = pneg %p344
      // Predicated region
      $region9: #{tpu_custom_call.1} parent=5 // pred_check
        _
      $region10: #{tpu_custom_call.1} parent=5 // pred_check_branch
        %347 = sbr.rel (%p344) target = $region12
      $region11: #{tpu_custom_call.1} parent=5 // pred_region
        %s348 = ssub.s32 %s30, 1
        // Predicated region
        $region13: #{tpu_custom_call.1} parent=11 // pred_check
          %p349 = pneg %p117
        $region14: #{tpu_custom_call.1} parent=11 // pred_check_branch
          %351 = sbr.rel (%p349) target = $region16
        $region15: #{tpu_custom_call.1} parent=11 // pred_region
          _
        $region16: #{tpu_custom_call.1} parent=11 // pred_fallthru
          _
        // Predicated region
        $region17: #{tpu_custom_call.1} parent=11 // pred_check
          %p352 = pneg %p138
        $region18: #{tpu_custom_call.1} parent=11 // pred_check_branch
          %354 = sbr.rel (%p352) target = $region20
        $region19: #{tpu_custom_call.1} parent=11 // pred_region
          _
        $region20: #{tpu_custom_call.1} parent=11 // pred_fallthru
          _
        // Predicated region
        $region21: #{tpu_custom_call.1} parent=11 // pred_check
          %p355 = pneg %p159
        $region22: #{tpu_custom_call.1} parent=11 // pred_check_branch
          %357 = sbr.rel (%p355) target = $region24
        $region23: #{tpu_custom_call.1} parent=11 // pred_region
          %s359 = ssub.s32 256, 256
          %360 = vsyncadd [#allocation6], %s359
          %s361 = sshll.u32 [#allocation7], 4
          %s362 = int_to_ptr.vmem [resolvable:$true] %s361
          %367 = dma.hbm_to_vmem [thread:$0]  %s4, 256, %s362, [#allocation6], 64, 64, 4
        $region24: #{tpu_custom_call.1} parent=11 // pred_fallthru
          _
        // Predicated region
        $region25: #{tpu_custom_call.1} parent=11 // pred_check
          %p368 = pneg %p180
        $region26: #{tpu_custom_call.1} parent=11 // pred_check_branch
          %370 = sbr.rel (%p368) target = $region28
        $region27: #{tpu_custom_call.1} parent=11 // pred_region
          %s372 = ssub.s32 16, 16
          %373 = vsyncadd [#allocation9], %s372
          %s375 = sshll.u32 [#allocation8], 4
          %s376 = int_to_ptr.vmem [resolvable:$true] %s375
          %378 = dma.hbm_to_vmem [thread:$0]  %s5, 16, %s376, [#allocation9]
        $region28: #{tpu_custom_call.1} parent=11 // pred_fallthru
          _
        // Predicated region
        $region29: #{tpu_custom_call.1} parent=11 // pred_check
          %p379 = pneg %p201
        $region30: #{tpu_custom_call.1} parent=11 // pred_check_branch
          %381 = sbr.rel (%p379) target = $region32
        $region31: #{tpu_custom_call.1} parent=11 // pred_region
          %s383 = ssub.s32 256, 256
          %384 = vsyncadd [#allocation9], %s383
          %s385 = sshll.u32 [#allocation10], 4
          %s386 = int_to_ptr.vmem [resolvable:$true] %s385
          %391 = dma.hbm_to_vmem [thread:$0]  %s6, 256, %s386, [#allocation9], 64, 64, 4
        $region32: #{tpu_custom_call.1} parent=11 // pred_fallthru
          _
        // Predicated region
        $region33: #{tpu_custom_call.1} parent=11 // pred_check
          %p392 = pneg %p222
        $region34: #{tpu_custom_call.1} parent=11 // pred_check_branch
          %394 = sbr.rel (%p392) target = $region36
        $region35: #{tpu_custom_call.1} parent=11 // pred_region
          %s396 = ssub.s32 16, 16
          %397 = vsyncadd [#allocation12], %s396
          %s399 = sshll.u32 [#allocation11], 4
          %s400 = int_to_ptr.vmem [resolvable:$true] %s399
          %402 = dma.hbm_to_vmem [thread:$0]  %s7, 16, %s400, [#allocation12]
        $region36: #{tpu_custom_call.1} parent=11 // pred_fallthru
          _
        // Predicated region
        $region37: #{tpu_custom_call.1} parent=11 // pred_check
          %p403 = pneg %p243
        $region38: #{tpu_custom_call.1} parent=11 // pred_check_branch
          %405 = sbr.rel (%p403) target = $region40
        $region39: #{tpu_custom_call.1} parent=11 // pred_region
          %s407 = ssub.s32 256, 256
          %408 = vsyncadd [#allocation12], %s407
          %s409 = sshll.u32 [#allocation13], 4
          %s410 = int_to_ptr.vmem [resolvable:$true] %s409
          %415 = dma.hbm_to_vmem [thread:$0]  %s8, 256, %s410, [#allocation12], 64, 64, 4
        $region40: #{tpu_custom_call.1} parent=11 // pred_fallthru
          _
        // Predicated region
        $region41: #{tpu_custom_call.1} parent=11 // pred_check
          %p416 = pneg %p264
        $region42: #{tpu_custom_call.1} parent=11 // pred_check_branch
          %418 = sbr.rel (%p416) target = $region44
        $region43: #{tpu_custom_call.1} parent=11 // pred_region
          %s420 = ssub.s32 16, 16
          %421 = vsyncadd [#allocation15], %s420
          %s423 = sshll.u32 [#allocation14], 4
          %s424 = int_to_ptr.vmem [resolvable:$true] %s423
          %426 = dma.hbm_to_vmem [thread:$0]  %s9, 16, %s424, [#allocation15]
        $region44: #{tpu_custom_call.1} parent=11 // pred_fallthru
          _
        // Predicated region
        $region45: #{tpu_custom_call.1} parent=11 // pred_check
          %p427 = pneg %p285
        $region46: #{tpu_custom_call.1} parent=11 // pred_check_branch
          %429 = sbr.rel (%p427) target = $region48
        $region47: #{tpu_custom_call.1} parent=11 // pred_region
          _
        $region48: #{tpu_custom_call.1} parent=11 // pred_fallthru
          _
        // Predicated region
        $region49: #{tpu_custom_call.1} parent=11 // pred_check
          %p430 = pneg %p306
        $region50: #{tpu_custom_call.1} parent=11 // pred_check_branch
          %432 = sbr.rel (%p430) target = $region52
        $region51: #{tpu_custom_call.1} parent=11 // pred_region
          _
        $region52: #{tpu_custom_call.1} parent=11 // pred_fallthru
          _
      $region12: #{tpu_custom_call.1} parent=5 // pred_fallthru
        _
      %p433 = scmp.lt.s32.totalorder %s30, 2
      // Predicated region
      $region53: #{tpu_custom_call.1} parent=5 // pred_check
        %p434 = pneg %p433
      $region54: #{tpu_custom_call.1} parent=5 // pred_check_branch
        %436 = sbr.rel (%p434) target = $region56
      $region55: #{tpu_custom_call.1} parent=5 // pred_region
        // Predicated region
        $region57: #{tpu_custom_call.1} parent=55 // pred_check
          %p437 = pneg %p64
        $region58: #{tpu_custom_call.1} parent=55 // pred_check_branch
          %439 = sbr.rel (%p437) target = $region60
        $region59: #{tpu_custom_call.1} parent=55 // pred_region
          %s440 = sand.u32 %s54, 1
          %s441 = scalar_lea.sflag [#allocation3], %s440
          %s442 = sand.u32 %s54, 1
          %s443 = smul.addr %s442, 8
          %s444 = scalar_lea.vmem [#allocation2], %s443
          %s446 = ssub.s32 128, 128
          %447 = vsyncadd %s441, %s446
          %s448 = sadd.s32 %s38, %s37
          %s449 = smul.addr %s448, 128
          %s450 = scalar_lea.hbm %s0, %s449
          %s452 = sshll.u32 %s444, 4
          %s453 = int_to_ptr.vmem [resolvable:$true] %s452
          %455 = dma.hbm_to_vmem [thread:$0]  %s450, 128, %s453, %s441
        $region60: #{tpu_custom_call.1} parent=55 // pred_fallthru
          _
        // Predicated region
        $region61: #{tpu_custom_call.1} parent=55 // pred_check
          %p456 = pneg %p90
        $region62: #{tpu_custom_call.1} parent=55 // pred_check_branch
          %458 = sbr.rel (%p456) target = $region64
        $region63: #{tpu_custom_call.1} parent=55 // pred_region
          %s459 = sand.u32 %s30, 1
          %s460 = scalar_lea.sflag [#allocation6], %s459
          %s461 = sand.u32 %s80, 1
          %s462 = smul.addr %s461, 8
          %s463 = scalar_lea.vmem [#allocation5], %s462
          %s465 = ssub.s32 128, 128
          %466 = vsyncadd %s460, %s465
          %s467 = smul.addr %s37, 128
          %s468 = scalar_lea.hbm %s1, %s467
          %s470 = sshll.u32 %s463, 4
          %s471 = int_to_ptr.vmem [resolvable:$true] %s470
          %473 = dma.hbm_to_vmem [thread:$0]  %s468, 128, %s471, %s460
        $region64: #{tpu_custom_call.1} parent=55 // pred_fallthru
          _
      $region56: #{tpu_custom_call.1} parent=5 // pred_fallthru
        _
      %p474 = scmp.le.s32.totalorder 1, %s30
      %p475 = scmp.lt.s32.totalorder %s30, 3
      %p476 = pnand %p474, %p475
      %p477 = pneg %p476
      // Predicated region
      $region65: #{tpu_custom_call.1} parent=5 // pred_check
        _
      $region66: #{tpu_custom_call.1} parent=5 // pred_check_branch
        %479 = sbr.rel (%p476) target = $region68
      $region67: #{tpu_custom_call.1} parent=5 // pred_region
        %s480 = ssub.s32 %s30, 1
        %s481 = sand.u32 %s57, 1
        %s482 = scalar_lea.sflag [#allocation3], %s481
        %s483 = sand.u32 %s57, 1
        %s484 = smul.addr %s483, 8
        %s485 = scalar_lea.vmem [#allocation2], %s484
        // Predicated region
        $region69: #{tpu_custom_call.1} parent=67 // pred_check
          %p486 = pneg %p70
        $region70: #{tpu_custom_call.1} parent=67 // pred_check_branch
          %488 = sbr.rel (%p486) target = $region72
        $region71: #{tpu_custom_call.1} parent=67 // pred_region
          %489 = dma.done %s482, 128
        $region72: #{tpu_custom_call.1} parent=67 // pred_fallthru
          _
        %s490 = sand.u32 %s35, 1
        %s491 = scalar_lea.sflag [#allocation6], %s490
        %s492 = sand.u32 %s83, 1
        %s493 = smul.addr %s492, 8
        %s494 = scalar_lea.vmem [#allocation5], %s493
        // Predicated region
        $region73: #{tpu_custom_call.1} parent=67 // pred_check
          %p495 = pneg %p96
        $region74: #{tpu_custom_call.1} parent=67 // pred_check_branch
          %497 = sbr.rel (%p495) target = $region76
        $region75: #{tpu_custom_call.1} parent=67 // pred_region
          %498 = dma.done %s491, 128
        $region76: #{tpu_custom_call.1} parent=67 // pred_fallthru
          _
        // Predicated region
        $region77: #{tpu_custom_call.1} parent=67 // pred_check
          %p499 = pneg %p159
        $region78: #{tpu_custom_call.1} parent=67 // pred_check_branch
          %501 = sbr.rel (%p499) target = $region80
        $region79: #{tpu_custom_call.1} parent=67 // pred_region
          %502 = dma.done [#allocation6], 256
        $region80: #{tpu_custom_call.1} parent=67 // pred_fallthru
          _
        // Predicated region
        $region81: #{tpu_custom_call.1} parent=67 // pred_check
          %p503 = pneg %p180
        $region82: #{tpu_custom_call.1} parent=67 // pred_check_branch
          %505 = sbr.rel (%p503) target = $region84
        $region83: #{tpu_custom_call.1} parent=67 // pred_region
          %506 = dma.done [#allocation9], 16
        $region84: #{tpu_custom_call.1} parent=67 // pred_fallthru
          _
        // Predicated region
        $region85: #{tpu_custom_call.1} parent=67 // pred_check
          %p507 = pneg %p201
        $region86: #{tpu_custom_call.1} parent=67 // pred_check_branch
          %509 = sbr.rel (%p507) target = $region88
        $region87: #{tpu_custom_call.1} parent=67 // pred_region
          %510 = dma.done [#allocation9], 256
        $region88: #{tpu_custom_call.1} parent=67 // pred_fallthru
          _
        // Predicated region
        $region89: #{tpu_custom_call.1} parent=67 // pred_check
          %p511 = pneg %p222
        $region90: #{tpu_custom_call.1} parent=67 // pred_check_branch
          %513 = sbr.rel (%p511) target = $region92
        $region91: #{tpu_custom_call.1} parent=67 // pred_region
          %514 = dma.done [#allocation12], 16
        $region92: #{tpu_custom_call.1} parent=67 // pred_fallthru
          _
        // Predicated region
        $region93: #{tpu_custom_call.1} parent=67 // pred_check
          %p515 = pneg %p243
        $region94: #{tpu_custom_call.1} parent=67 // pred_check_branch
          %517 = sbr.rel (%p515) target = $region96
        $region95: #{tpu_custom_call.1} parent=67 // pred_region
          %518 = dma.done [#allocation12], 256
        $region96: #{tpu_custom_call.1} parent=67 // pred_fallthru
          _
        // Predicated region
        $region97: #{tpu_custom_call.1} parent=67 // pred_check
          %p519 = pneg %p264
        $region98: #{tpu_custom_call.1} parent=67 // pred_check_branch
          %521 = sbr.rel (%p519) target = $region100
        $region99: #{tpu_custom_call.1} parent=67 // pred_region
          %522 = dma.done [#allocation15], 16
        $region100: #{tpu_custom_call.1} parent=67 // pred_fallthru
          _
        %s523 = sand.u32 %s57, 1
        %s524 = scalar_lea.sflag [#allocation3], %s523
        %s525 = sand.u32 %s57, 1
        %s526 = smul.addr %s525, 8
        %s527 = scalar_lea.vmem [#allocation2], %s526
        %p528 = pneg %p70
        %p529 = pneg %p67
        %s530 = sand.u32 %s35, 1
        %s531 = scalar_lea.sflag [#allocation6], %s530
        %s532 = sand.u32 %s83, 1
        %s533 = smul.addr %s532, 8
        %s534 = scalar_lea.vmem [#allocation5], %s533
        %p535 = pneg %p96
        %p536 = pneg %p93
        %p537 = pneg %p117
        %p538 = pneg %p114
        %p539 = pneg %p138
        %p540 = pneg %p135
        %p541 = pneg %p159
        %p542 = pneg %p156
        %p543 = pneg %p180
        %p544 = pneg %p177
        %p545 = pneg %p201
        %p546 = pneg %p198
        %p547 = pneg %p222
        %p548 = pneg %p219
        %p549 = pneg %p243
        %p550 = pneg %p240
        %p551 = pneg %p264
        %p552 = pneg %p261
        %p553 = pneg %p285
        %p554 = pneg %p282
        %p555 = pneg %p306
        %p556 = pneg %p303
        %p557 = pneg %p334
        %p558 = pneg %p331
        %s559 = sand.u32 %s321, 1
        %s560 = scalar_lea.sflag [#allocation4], %s559
        %s561 = sand.u32 %s321, 1
        %s562 = smul.addr %s561, 8
        %s563 = scalar_lea.vmem [#allocation16], %s562
        %v565 = vld [vmem:[%s485] sm:$0xff]
        %v566 = vld [vmem:[%s494] sm:$0xff]
        %v567 = vld [vmem:[%s2] sm:$0x1]
        %v568 = vld [vmem:[%s3] sm:$0x1]
        %vm569 = vcmask 261120
        %v570 = vsel %vm569, %v565, 0.0
        %571 = vadd.xlane.f32.xlu0 %v570
        %v572 = vpop.xlane.xlu0 %571
        %v573 = vrcp.pop 32.0
        %v574 = vmul.f32 %v572, %v573
        %v575 = vsub.f32 %v565, %v574
        %v576 = vmul.f32 %v575, %v575
        %v577 = vsel %vm569, %v576, 0.0
        %578 = vadd.xlane.f32.xlu0 %v577
        %v579 = vpop.xlane.xlu0 %578
        %v580 = vmul.f32 %v579, %v573
        %v581 = vadd.f32 %v580, 1e-05
        %v582 = vrsqrt.pop %v581
        %v583 = vmul.f32 %v575, %v582
        %v585 = vlaneseq
        %v586 = vshrl.u32 %v585, 7
        %v587 = vsub.s32 0, %v586
        %v588 = vrot.slane %v567, %v587
        %v590 = vmul.f32 %v583, %v588
        %v592 = vlaneseq
        %v593 = vshrl.u32 %v592, 7
        %v594 = vsub.s32 0, %v593
        %v595 = vrot.slane %v568, %v594
        %v597 = vadd.f32 %v590, %v595
        %v598 = vsel %vm569, %v566, 0.0
        %599 = vadd.xlane.f32.xlu0 %v598
        %v600 = vpop.xlane.xlu0 %599
        %v601 = vmul.f32 %v600, %v573
        %v602 = vsub.f32 %v566, %v601
        %v603 = vmul.f32 %v602, %v602
        %v604 = vsel %vm569, %v603, 0.0
        %605 = vadd.xlane.f32.xlu0 %v604
        %v606 = vpop.xlane.xlu0 %605
        %v607 = vmul.f32 %v606, %v573
        %v608 = vadd.f32 %v607, 1e-05
        %v609 = vrsqrt.pop %v608
        %v610 = vmul.f32 %v602, %v609
        %v611 = vmul.f32 %v610, %v588
        %v612 = vadd.f32 %v611, %v595
        %v613 = vpack.c.bf16 %v597, %v597
        %v614 = vld [vmem:[#allocation7] sm:$0xf]
        %v615 = vld [vmem:[#allocation7 + $0x4] sm:$0xf]
        %v616 = vld [vmem:[#allocation7 + $0x8] sm:$0xf]
        %v617 = vld [vmem:[#allocation7 + $0xc] sm:$0xf]
        %v618 = vld [vmem:[#allocation8] sm:$0x1]
        %v620 = vlaneseq
        %v621 = vshrl.u32 %v620, 7
        %v622 = vsub.s32 0, %v621
        %v623 = vrot.slane %v618, %v622
        %v629 = vunpack.c.l.b16 %v614
        %v630 = vunpack.c.l.b16 %v615
        %v631 = vunpack.c.l.b16 %v616
        %v632 = vunpack.c.l.b16 %v617
        %v633 = vpack.c.b16 %v630, %v629
        %v634 = vpack.c.b16 %v632, %v631
        %v638 = vsel %vm569, %v613, 0
        %640 = vmatprep.subr.bf16.mxu0 0
        %641 = vmatpush1.bf16.msra.mxu0 0
        %642 = vmatprep.subr.bf16.mxu0 0
        %643 = vmatpush1.bf16.msra.mxu0 0
        %644 = vmatprep.subr.bf16.mxu0 0
        %645 = vmatpush1.bf16.msra.mxu0 0
        %646 = vmatprep.subr.bf16.mxu0 0
        %647 = vmatpush1.bf16.msra.mxu0 0
        %648 = vmatprep.subr.bf16.mxu0 0
        %649 = vmatpush1.bf16.msra.mxu0 0
        %650 = vmatprep.subr.bf16.mxu0 0
        %651 = vmatpush1.bf16.msra.mxu0 0
        %652 = vmatprep.subr.bf16.mxu0 0
        %653 = vmatpush1.bf16.msra.mxu0 %v634
        %654 = vmatprep.subr.bf16.mxu0 0
        %655 = vmatpush1.bf16.msra.mxu0 %v633
        %656 = vmatprep.subr.bf16.mxu0 0
        %657 = vmatpush2.bf16.msra.mxu0 0
        %658 = vmatprep.subr.bf16.mxu0 0
        %659 = vmatpush2.bf16.msra.mxu0 0
        %660 = vmatprep.subr.bf16.mxu0 0
        %661 = vmatpush2.bf16.msra.mxu0 0
        %662 = vmatprep.subr.bf16.mxu0 0
        %663 = vmatpush2.bf16.msra.mxu0 0
        %664 = vmatprep.subr.bf16.mxu0 0
        %665 = vmatpush2.bf16.msra.mxu0 0
        %666 = vmatprep.subr.bf16.mxu0 0
        %667 = vmatpush2.bf16.msra.mxu0 0
        %668 = vmatprep.subr.bf16.mxu0 0
        %669 = vmatpush2.bf16.msra.mxu0 0
        %670 = vmatprep.subr.bf16.mxu0 0
        %671 = vmatpush2.bf16.msra.mxu0 0
        %672 = vmatprep.mubr.bf16.mxu0 0
        %673 = vmatmul.mubr.bf16.gmra.mxu0 %v638
        %v674 = vpop.f32.mrf.mxu0
        %v675 = vadd.f32 %v623, %v674
        %v676 = vpop.f32.mrf.mxu0
        %v677 = vpop.f32.mrf.mxu0
        %v678 = vpop.f32.mrf.mxu0
        %679 = vdwg.mxu0
        %v680 = vpack.c.bf16 %v612, %v612
        %v681 = vld [vmem:[#allocation10] sm:$0xf]
        %v682 = vld [vmem:[#allocation10 + $0x4] sm:$0xf]
        %v683 = vld [vmem:[#allocation10 + $0x8] sm:$0xf]
        %v684 = vld [vmem:[#allocation10 + $0xc] sm:$0xf]
        %v685 = vld [vmem:[#allocation11] sm:$0x1]
        %v687 = vlaneseq
        %v688 = vshrl.u32 %v687, 7
        %v689 = vsub.s32 0, %v688
        %v690 = vrot.slane %v685, %v689
        %v696 = vunpack.c.l.b16 %v681
        %v697 = vunpack.c.l.b16 %v682
        %v698 = vunpack.c.l.b16 %v683
        %v699 = vunpack.c.l.b16 %v684
        %v700 = vpack.c.b16 %v697, %v696
        %v701 = vpack.c.b16 %v699, %v698
        %v705 = vsel %vm569, %v680, 0
        %707 = vmatprep.subr.bf16.mxu0 0
        %708 = vmatpush1.bf16.msra.mxu0 0
        %709 = vmatprep.subr.bf16.mxu0 0
        %710 = vmatpush1.bf16.msra.mxu0 0
        %711 = vmatprep.subr.bf16.mxu0 0
        %712 = vmatpush1.bf16.msra.mxu0 0
        %713 = vmatprep.subr.bf16.mxu0 0
        %714 = vmatpush1.bf16.msra.mxu0 0
        %715 = vmatprep.subr.bf16.mxu0 0
        %716 = vmatpush1.bf16.msra.mxu0 0
        %717 = vmatprep.subr.bf16.mxu0 0
        %718 = vmatpush1.bf16.msra.mxu0 0
        %719 = vmatprep.subr.bf16.mxu0 0
        %720 = vmatpush1.bf16.msra.mxu0 %v701
        %721 = vmatprep.subr.bf16.mxu0 0
        %722 = vmatpush1.bf16.msra.mxu0 %v700
        %723 = vmatprep.subr.bf16.mxu0 0
        %724 = vmatpush2.bf16.msra.mxu0 0
        %725 = vmatprep.subr.bf16.mxu0 0
        %726 = vmatpush2.bf16.msra.mxu0 0
        %727 = vmatprep.subr.bf16.mxu0 0
        %728 = vmatpush2.bf16.msra.mxu0 0
        %729 = vmatprep.subr.bf16.mxu0 0
        %730 = vmatpush2.bf16.msra.mxu0 0
        %731 = vmatprep.subr.bf16.mxu0 0
        %732 = vmatpush2.bf16.msra.mxu0 0
        %733 = vmatprep.subr.bf16.mxu0 0
        %734 = vmatpush2.bf16.msra.mxu0 0
        %735 = vmatprep.subr.bf16.mxu0 0
        %736 = vmatpush2.bf16.msra.mxu0 0
        %737 = vmatprep.subr.bf16.mxu0 0
        %738 = vmatpush2.bf16.msra.mxu0 0
        %739 = vmatprep.mubr.bf16.mxu0 0
        %740 = vmatmul.mubr.bf16.gmra.mxu0 %v705
        %v741 = vpop.f32.mrf.mxu0
        %v742 = vadd.f32 %v690, %v741
        %v743 = vpop.f32.mrf.mxu0
        %v744 = vpop.f32.mrf.mxu0
        %v745 = vpop.f32.mrf.mxu0
        %746 = vdwg.mxu0
        %v747 = vld [vmem:[#allocation13] sm:$0xf]
        %v748 = vld [vmem:[#allocation13 + $0x4] sm:$0xf]
        %v749 = vld [vmem:[#allocation13 + $0x8] sm:$0xf]
        %v750 = vld [vmem:[#allocation13 + $0xc] sm:$0xf]
        %v751 = vld [vmem:[#allocation14] sm:$0x1]
        %v753 = vlaneseq
        %v754 = vshrl.u32 %v753, 7
        %v755 = vsub.s32 0, %v754
        %v756 = vrot.slane %v751, %v755
        %v762 = vunpack.c.l.b16 %v747
        %v763 = vunpack.c.l.b16 %v748
        %v764 = vunpack.c.l.b16 %v749
        %v765 = vunpack.c.l.b16 %v750
        %v766 = vpack.c.b16 %v763, %v762
        %v767 = vpack.c.b16 %v765, %v764
        %770 = vmatprep.subr.bf16.mxu0 0
        %771 = vmatpush1.bf16.msra.mxu0 0
        %772 = vmatprep.subr.bf16.mxu0 0
        %773 = vmatpush1.bf16.msra.mxu0 0
        %774 = vmatprep.subr.bf16.mxu0 0
        %775 = vmatpush1.bf16.msra.mxu0 0
        %776 = vmatprep.subr.bf16.mxu0 0
        %777 = vmatpush1.bf16.msra.mxu0 0
        %778 = vmatprep.subr.bf16.mxu0 0
        %779 = vmatpush1.bf16.msra.mxu0 0
        %780 = vmatprep.subr.bf16.mxu0 0
        %781 = vmatpush1.bf16.msra.mxu0 0
        %782 = vmatprep.subr.bf16.mxu0 0
        %783 = vmatpush1.bf16.msra.mxu0 %v767
        %784 = vmatprep.subr.bf16.mxu0 0
        %785 = vmatpush1.bf16.msra.mxu0 %v766
        %786 = vmatprep.subr.bf16.mxu0 0
        %787 = vmatpush2.bf16.msra.mxu0 0
        %788 = vmatprep.subr.bf16.mxu0 0
        %789 = vmatpush2.bf16.msra.mxu0 0
        %790 = vmatprep.subr.bf16.mxu0 0
        %791 = vmatpush2.bf16.msra.mxu0 0
        %792 = vmatprep.subr.bf16.mxu0 0
        %793 = vmatpush2.bf16.msra.mxu0 0
        %794 = vmatprep.subr.bf16.mxu0 0
        %795 = vmatpush2.bf16.msra.mxu0 0
        %796 = vmatprep.subr.bf16.mxu0 0
        %797 = vmatpush2.bf16.msra.mxu0 0
        %798 = vmatprep.subr.bf16.mxu0 0
        %799 = vmatpush2.bf16.msra.mxu0 0
        %800 = vmatprep.subr.bf16.mxu0 0
        %801 = vmatpush2.bf16.msra.mxu0 0
        %802 = vmatprep.mubr.bf16.mxu0 0
        %803 = vmatmul.mubr.bf16.gmra.mxu0 %v705
        %v804 = vpop.f32.mrf.mxu0
        %v805 = vadd.f32 %v756, %v804
        %v806 = vpop.f32.mrf.mxu0
        %v807 = vpop.f32.mrf.mxu0
        %v808 = vpop.f32.mrf.mxu0
        %809 = vdwg.mxu0
        %v810 = vpack.c.bf16 %v675, %v675
        %v811 = vpack.c.bf16 %v742, %v742
        %v812 = vpack.c.bf16 %v805, %v805
        %vm813 = vcmask 64512
        %v815 = vsel %vm813, %v810, 0
        %v818 = vsel %vm813, %v811, 0
        %820 = vmatprep.subr.bf16.mxu0 0
        %821 = vmatpush1.bf16.xpose.msra.mxu0 0
        %822 = vmatprep.subr.bf16.mxu0 0
        %823 = vmatpush1.bf16.xpose.msra.mxu0 0
        %824 = vmatprep.subr.bf16.mxu0 0
        %825 = vmatpush1.bf16.xpose.msra.mxu0 0
        %826 = vmatprep.subr.bf16.mxu0 0
        %827 = vmatpush1.bf16.xpose.msra.mxu0 0
        %828 = vmatprep.subr.bf16.mxu0 0
        %829 = vmatpush1.bf16.xpose.msra.mxu0 0
        %830 = vmatprep.subr.bf16.mxu0 0
        %831 = vmatpush1.bf16.xpose.msra.mxu0 0
        %832 = vmatprep.subr.bf16.mxu0 0
        %833 = vmatpush1.bf16.xpose.msra.mxu0 0
        %834 = vmatprep.subr.bf16.mxu0 0
        %835 = vmatpush1.bf16.xpose.msra.mxu0 %v818
        %836 = vmatprep.subr.bf16.mxu0 0
        %837 = vmatpush2.bf16.xpose.msra.mxu0 0
        %838 = vmatprep.subr.bf16.mxu0 0
        %839 = vmatpush2.bf16.xpose.msra.mxu0 0
        %840 = vmatprep.subr.bf16.mxu0 0
        %841 = vmatpush2.bf16.xpose.msra.mxu0 0
        %842 = vmatprep.subr.bf16.mxu0 0
        %843 = vmatpush2.bf16.xpose.msra.mxu0 0
        %844 = vmatprep.subr.bf16.mxu0 0
        %845 = vmatpush2.bf16.xpose.msra.mxu0 0
        %846 = vmatprep.subr.bf16.mxu0 0
        %847 = vmatpush2.bf16.xpose.msra.mxu0 0
        %848 = vmatprep.subr.bf16.mxu0 0
        %849 = vmatpush2.bf16.xpose.msra.mxu0 0
        %850 = vmatprep.subr.bf16.mxu0 0
        %851 = vmatpush2.bf16.xpose.msra.mxu0 0
        %852 = vmatprep.mubr.bf16.mxu0 0
        %853 = vmatmul.mubr.bf16.gmra.mxu0 %v815
        %v854 = vpop.f32.mrf.mxu0
        %v855 = vadd.f32 0.0, %v854
        %v856 = vpop.f32.mrf.mxu0
        %v857 = vpop.f32.mrf.mxu0
        %v858 = vpop.f32.mrf.mxu0
        %859 = vdwg.mxu0
        %v860 = vmul.f32 %v855, 0.35355338
        %v861 = vsel %vm813, %v860, -inf
        %862 = vmax.xlane.f32.xlu0 %v861
        %v863 = vpop.xlane.xlu0 %862
        %v864 = vsub.f32 %v860, %v863
        %v865 = vmul.f32 %v864, 1.442695
        %v866 = vpow.pop %v865
        %v867 = vsel %vm813, %v866, 0.0
        %868 = vadd.xlane.f32.xlu0 %v867
        %v869 = vpop.xlane.xlu0 %868
        %v870 = vrcp.pop %v869
        %v871 = vmul.f32 %v866, %v870
        %v872 = vpack.c.bf16 %v871, %v871
        %v874 = vsel %vm813, %v872, 0
        %vm876 = vcmask 1043456
        %v878 = vsel %vm876, %v812, 0
        %880 = vmatprep.subr.bf16.mxu0 0
        %881 = vmatpush1.bf16.msra.mxu0 0
        %882 = vmatprep.subr.bf16.mxu0 0
        %883 = vmatpush1.bf16.msra.mxu0 0
        %884 = vmatprep.subr.bf16.mxu0 0
        %885 = vmatpush1.bf16.msra.mxu0 0
        %886 = vmatprep.subr.bf16.mxu0 0
        %887 = vmatpush1.bf16.msra.mxu0 0
        %888 = vmatprep.subr.bf16.mxu0 0
        %889 = vmatpush1.bf16.msra.mxu0 0
        %890 = vmatprep.subr.bf16.mxu0 0
        %891 = vmatpush1.bf16.msra.mxu0 0
        %892 = vmatprep.subr.bf16.mxu0 0
        %893 = vmatpush1.bf16.msra.mxu0 0
        %894 = vmatprep.subr.bf16.mxu0 0
        %895 = vmatpush1.bf16.msra.mxu0 %v878
        %896 = vmatprep.subr.bf16.mxu0 0
        %897 = vmatpush2.bf16.msra.mxu0 0
        %898 = vmatprep.subr.bf16.mxu0 0
        %899 = vmatpush2.bf16.msra.mxu0 0
        %900 = vmatprep.subr.bf16.mxu0 0
        %901 = vmatpush2.bf16.msra.mxu0 0
        %902 = vmatprep.subr.bf16.mxu0 0
        %903 = vmatpush2.bf16.msra.mxu0 0
        %904 = vmatprep.subr.bf16.mxu0 0
        %905 = vmatpush2.bf16.msra.mxu0 0
        %906 = vmatprep.subr.bf16.mxu0 0
        %907 = vmatpush2.bf16.msra.mxu0 0
        %908 = vmatprep.subr.bf16.mxu0 0
        %909 = vmatpush2.bf16.msra.mxu0 0
        %910 = vmatprep.subr.bf16.mxu0 0
        %911 = vmatpush2.bf16.msra.mxu0 0
        %912 = vmatprep.mubr.bf16.mxu0 0
        %913 = vmatmul.mubr.bf16.gmra.mxu0 %v874
        %v914 = vpop.f32.mrf.mxu0
        %v915 = vadd.f32 0.0, %v914
        %v916 = vpop.f32.mrf.mxu0
        %v917 = vpop.f32.mrf.mxu0
        %v918 = vpop.f32.mrf.mxu0
        %919 = vdwg.mxu0
        %921 = vrot.lane.b32.xlu0 %v810, 120
        %v922 = vpop.permute.xlu0 %921
        %924 = vrot.lane.b32.xlu0 %v811, 120
        %v925 = vpop.permute.xlu0 %924
        %v927 = vsel %vm813, %v922, 0
        %v930 = vsel %vm813, %v925, 0
        %932 = vmatprep.subr.bf16.mxu0 0
        %933 = vmatpush1.bf16.xpose.msra.mxu0 0
        %934 = vmatprep.subr.bf16.mxu0 0
        %935 = vmatpush1.bf16.xpose.msra.mxu0 0
        %936 = vmatprep.subr.bf16.mxu0 0
        %937 = vmatpush1.bf16.xpose.msra.mxu0 0
        %938 = vmatprep.subr.bf16.mxu0 0
        %939 = vmatpush1.bf16.xpose.msra.mxu0 0
        %940 = vmatprep.subr.bf16.mxu0 0
        %941 = vmatpush1.bf16.xpose.msra.mxu0 0
        %942 = vmatprep.subr.bf16.mxu0 0
        %943 = vmatpush1.bf16.xpose.msra.mxu0 0
        %944 = vmatprep.subr.bf16.mxu0 0
        %945 = vmatpush1.bf16.xpose.msra.mxu0 0
        %946 = vmatprep.subr.bf16.mxu0 0
        %947 = vmatpush1.bf16.xpose.msra.mxu0 %v930
        %948 = vmatprep.subr.bf16.mxu0 0
        %949 = vmatpush2.bf16.xpose.msra.mxu0 0
        %950 = vmatprep.subr.bf16.mxu0 0
        %951 = vmatpush2.bf16.xpose.msra.mxu0 0
        %952 = vmatprep.subr.bf16.mxu0 0
        %953 = vmatpush2.bf16.xpose.msra.mxu0 0
        %954 = vmatprep.subr.bf16.mxu0 0
        %955 = vmatpush2.bf16.xpose.msra.mxu0 0
        %956 = vmatprep.subr.bf16.mxu0 0
        %957 = vmatpush2.bf16.xpose.msra.mxu0 0
        %958 = vmatprep.subr.bf16.mxu0 0
        %959 = vmatpush2.bf16.xpose.msra.mxu0 0
        %960 = vmatprep.subr.bf16.mxu0 0
        %961 = vmatpush2.bf16.xpose.msra.mxu0 0
        %962 = vmatprep.subr.bf16.mxu0 0
        %963 = vmatpush2.bf16.xpose.msra.mxu0 0
        %964 = vmatprep.mubr.bf16.mxu0 0
        %965 = vmatmul.mubr.bf16.gmra.mxu0 %v927
        %v966 = vpop.f32.mrf.mxu0
        %v967 = vadd.f32 0.0, %v966
        %v968 = vpop.f32.mrf.mxu0
        %v969 = vpop.f32.mrf.mxu0
        %v970 = vpop.f32.mrf.mxu0
        %971 = vdwg.mxu0
        %v972 = vmul.f32 %v967, 0.35355338
        %v973 = vsel %vm813, %v972, -inf
        %974 = vmax.xlane.f32.xlu0 %v973
        %v975 = vpop.xlane.xlu0 %974
        %v976 = vsub.f32 %v972, %v975
        %v977 = vmul.f32 %v976, 1.442695
        %v978 = vpow.pop %v977
        %v979 = vsel %vm813, %v978, 0.0
        %980 = vadd.xlane.f32.xlu0 %v979
        %v981 = vpop.xlane.xlu0 %980
        %v982 = vrcp.pop %v981
        %v983 = vmul.f32 %v978, %v982
        %v984 = vpack.c.bf16 %v983, %v983
        %986 = vrot.lane.b32.xlu0 %v812, 120
        %v987 = vpop.permute.xlu0 %986
        %v989 = vsel %vm813, %v984, 0
        %v992 = vsel %vm876, %v987, 0
        %994 = vmatprep.subr.bf16.mxu0 0
        %995 = vmatpush1.bf16.msra.mxu0 0
        %996 = vmatprep.subr.bf16.mxu0 0
        %997 = vmatpush1.bf16.msra.mxu0 0
        %998 = vmatprep.subr.bf16.mxu0 0
        %999 = vmatpush1.bf16.msra.mxu0 0
        %1000 = vmatprep.subr.bf16.mxu0 0
        %1001 = vmatpush1.bf16.msra.mxu0 0
        %1002 = vmatprep.subr.bf16.mxu0 0
        %1003 = vmatpush1.bf16.msra.mxu0 0
        %1004 = vmatprep.subr.bf16.mxu0 0
        %1005 = vmatpush1.bf16.msra.mxu0 0
        %1006 = vmatprep.subr.bf16.mxu0 0
        %1007 = vmatpush1.bf16.msra.mxu0 0
        %1008 = vmatprep.subr.bf16.mxu0 0
        %1009 = vmatpush1.bf16.msra.mxu0 %v992
        %1010 = vmatprep.subr.bf16.mxu0 0
        %1011 = vmatpush2.bf16.msra.mxu0 0
        %1012 = vmatprep.subr.bf16.mxu0 0
        %1013 = vmatpush2.bf16.msra.mxu0 0
        %1014 = vmatprep.subr.bf16.mxu0 0
        %1015 = vmatpush2.bf16.msra.mxu0 0
        %1016 = vmatprep.subr.bf16.mxu0 0
        %1017 = vmatpush2.bf16.msra.mxu0 0
        %1018 = vmatprep.subr.bf16.mxu0 0
        %1019 = vmatpush2.bf16.msra.mxu0 0
        %1020 = vmatprep.subr.bf16.mxu0 0
        %1021 = vmatpush2.bf16.msra.mxu0 0
        %1022 = vmatprep.subr.bf16.mxu0 0
        %1023 = vmatpush2.bf16.msra.mxu0 0
        %1024 = vmatprep.subr.bf16.mxu0 0
        %1025 = vmatpush2.bf16.msra.mxu0 0
        %1026 = vmatprep.mubr.bf16.mxu0 0
        %1027 = vmatmul.mubr.bf16.gmra.mxu0 %v989
        %v1028 = vpop.f32.mrf.mxu0
        %v1029 = vadd.f32 0.0, %v1028
        %v1030 = vpop.f32.mrf.mxu0
        %v1031 = vpop.f32.mrf.mxu0
        %v1032 = vpop.f32.mrf.mxu0
        %1033 = vdwg.mxu0
        %1034 = vrot.lane.b32.xlu0 %v810, 112
        %v1035 = vpop.permute.xlu0 %1034
        %1036 = vrot.lane.b32.xlu0 %v811, 112
        %v1037 = vpop.permute.xlu0 %1036
        %v1039 = vsel %vm813, %v1035, 0
        %v1042 = vsel %vm813, %v1037, 0
        %1044 = vmatprep.subr.bf16.mxu0 0
        %1045 = vmatpush1.bf16.xpose.msra.mxu0 0
        %1046 = vmatprep.subr.bf16.mxu0 0
        %1047 = vmatpush1.bf16.xpose.msra.mxu0 0
        %1048 = vmatprep.subr.bf16.mxu0 0
        %1049 = vmatpush1.bf16.xpose.msra.mxu0 0
        %1050 = vmatprep.subr.bf16.mxu0 0
        %1051 = vmatpush1.bf16.xpose.msra.mxu0 0
        %1052 = vmatprep.subr.bf16.mxu0 0
        %1053 = vmatpush1.bf16.xpose.msra.mxu0 0
        %1054 = vmatprep.subr.bf16.mxu0 0
        %1055 = vmatpush1.bf16.xpose.msra.mxu0 0
        %1056 = vmatprep.subr.bf16.mxu0 0
        %1057 = vmatpush1.bf16.xpose.msra.mxu0 0
        %1058 = vmatprep.subr.bf16.mxu0 0
        %1059 = vmatpush1.bf16.xpose.msra.mxu0 %v1042
        %1060 = vmatprep.subr.bf16.mxu0 0
        %1061 = vmatpush2.bf16.xpose.msra.mxu0 0
        %1062 = vmatprep.subr.bf16.mxu0 0
        %1063 = vmatpush2.bf16.xpose.msra.mxu0 0
        %1064 = vmatprep.subr.bf16.mxu0 0
        %1065 = vmatpush2.bf16.xpose.msra.mxu0 0
        %1066 = vmatprep.subr.bf16.mxu0 0
        %1067 = vmatpush2.bf16.xpose.msra.mxu0 0
        %1068 = vmatprep.subr.bf16.mxu0 0
        %1069 = vmatpush2.bf16.xpose.msra.mxu0 0
        %1070 = vmatprep.subr.bf16.mxu0 0
        %1071 = vmatpush2.bf16.xpose.msra.mxu0 0
        %1072 = vmatprep.subr.bf16.mxu0 0
        %1073 = vmatpush2.bf16.xpose.msra.mxu0 0
        %1074 = vmatprep.subr.bf16.mxu0 0
        %1075 = vmatpush2.bf16.xpose.msra.mxu0 0
        %1076 = vmatprep.mubr.bf16.mxu0 0
        %1077 = vmatmul.mubr.bf16.gmra.mxu0 %v1039
        %v1078 = vpop.f32.mrf.mxu0
        %v1079 = vadd.f32 0.0, %v1078
        %v1080 = vpop.f32.mrf.mxu0
        %v1081 = vpop.f32.mrf.mxu0
        %v1082 = vpop.f32.mrf.mxu0
        %1083 = vdwg.mxu0
        %v1084 = vmul.f32 %v1079, 0.35355338
        %v1085 = vsel %vm813, %v1084, -inf
        %1086 = vmax.xlane.f32.xlu0 %v1085
        %v1087 = vpop.xlane.xlu0 %1086
        %v1088 = vsub.f32 %v1084, %v1087
        %v1089 = vmul.f32 %v1088, 1.442695
        %v1090 = vpow.pop %v1089
        %v1091 = vsel %vm813, %v1090, 0.0
        %1092 = vadd.xlane.f32.xlu0 %v1091
        %v1093 = vpop.xlane.xlu0 %1092
        %v1094 = vrcp.pop %v1093
        %v1095 = vmul.f32 %v1090, %v1094
        %v1096 = vpack.c.bf16 %v1095, %v1095
        %1097 = vrot.lane.b32.xlu0 %v812, 112
        %v1098 = vpop.permute.xlu0 %1097
        %v1100 = vsel %vm813, %v1096, 0
        %v1103 = vsel %vm876, %v1098, 0
        %1105 = vmatprep.subr.bf16.mxu0 0
        %1106 = vmatpush1.bf16.msra.mxu0 0
        %1107 = vmatprep.subr.bf16.mxu0 0
        %1108 = vmatpush1.bf16.msra.mxu0 0
        %1109 = vmatprep.subr.bf16.mxu0 0
        %1110 = vmatpush1.bf16.msra.mxu0 0
        %1111 = vmatprep.subr.bf16.mxu0 0
        %1112 = vmatpush1.bf16.msra.mxu0 0
        %1113 = vmatprep.subr.bf16.mxu0 0
        %1114 = vmatpush1.bf16.msra.mxu0 0
        %1115 = vmatprep.subr.bf16.mxu0 0
        %1116 = vmatpush1.bf16.msra.mxu0 0
        %1117 = vmatprep.subr.bf16.mxu0 0
        %1118 = vmatpush1.bf16.msra.mxu0 0
        %1119 = vmatprep.subr.bf16.mxu0 0
        %1120 = vmatpush1.bf16.msra.mxu0 %v1103
        %1121 = vmatprep.subr.bf16.mxu0 0
        %1122 = vmatpush2.bf16.msra.mxu0 0
        %1123 = vmatprep.subr.bf16.mxu0 0
        %1124 = vmatpush2.bf16.msra.mxu0 0
        %1125 = vmatprep.subr.bf16.mxu0 0
        %1126 = vmatpush2.bf16.msra.mxu0 0
        %1127 = vmatprep.subr.bf16.mxu0 0
        %1128 = vmatpush2.bf16.msra.mxu0 0
        %1129 = vmatprep.subr.bf16.mxu0 0
        %1130 = vmatpush2.bf16.msra.mxu0 0
        %1131 = vmatprep.subr.bf16.mxu0 0
        %1132 = vmatpush2.bf16.msra.mxu0 0
        %1133 = vmatprep.subr.bf16.mxu0 0
        %1134 = vmatpush2.bf16.msra.mxu0 0
        %1135 = vmatprep.subr.bf16.mxu0 0
        %1136 = vmatpush2.bf16.msra.mxu0 0
        %1137 = vmatprep.mubr.bf16.mxu0 0
        %1138 = vmatmul.mubr.bf16.gmra.mxu0 %v1100
        %v1139 = vpop.f32.mrf.mxu0
        %v1140 = vadd.f32 0.0, %v1139
        %v1141 = vpop.f32.mrf.mxu0
        %v1142 = vpop.f32.mrf.mxu0
        %v1143 = vpop.f32.mrf.mxu0
        %1144 = vdwg.mxu0
        %1145 = vrot.lane.b32.xlu0 %v810, 104
        %v1146 = vpop.permute.xlu0 %1145
        %1147 = vrot.lane.b32.xlu0 %v811, 104
        %v1148 = vpop.permute.xlu0 %1147
        %v1150 = vsel %vm813, %v1146, 0
        %v1153 = vsel %vm813, %v1148, 0
        %1155 = vmatprep.subr.bf16.mxu0 0
        %1156 = vmatpush1.bf16.xpose.msra.mxu0 0
        %1157 = vmatprep.subr.bf16.mxu0 0
        %1158 = vmatpush1.bf16.xpose.msra.mxu0 0
        %1159 = vmatprep.subr.bf16.mxu0 0
        %1160 = vmatpush1.bf16.xpose.msra.mxu0 0
        %1161 = vmatprep.subr.bf16.mxu0 0
        %1162 = vmatpush1.bf16.xpose.msra.mxu0 0
        %1163 = vmatprep.subr.bf16.mxu0 0
        %1164 = vmatpush1.bf16.xpose.msra.mxu0 0
        %1165 = vmatprep.subr.bf16.mxu0 0
        %1166 = vmatpush1.bf16.xpose.msra.mxu0 0
        %1167 = vmatprep.subr.bf16.mxu0 0
        %1168 = vmatpush1.bf16.xpose.msra.mxu0 0
        %1169 = vmatprep.subr.bf16.mxu0 0
        %1170 = vmatpush1.bf16.xpose.msra.mxu0 %v1153
        %1171 = vmatprep.subr.bf16.mxu0 0
        %1172 = vmatpush2.bf16.xpose.msra.mxu0 0
        %1173 = vmatprep.subr.bf16.mxu0 0
        %1174 = vmatpush2.bf16.xpose.msra.mxu0 0
        %1175 = vmatprep.subr.bf16.mxu0 0
        %1176 = vmatpush2.bf16.xpose.msra.mxu0 0
        %1177 = vmatprep.subr.bf16.mxu0 0
        %1178 = vmatpush2.bf16.xpose.msra.mxu0 0
        %1179 = vmatprep.subr.bf16.mxu0 0
        %1180 = vmatpush2.bf16.xpose.msra.mxu0 0
        %1181 = vmatprep.subr.bf16.mxu0 0
        %1182 = vmatpush2.bf16.xpose.msra.mxu0 0
        %1183 = vmatprep.subr.bf16.mxu0 0
        %1184 = vmatpush2.bf16.xpose.msra.mxu0 0
        %1185 = vmatprep.subr.bf16.mxu0 0
        %1186 = vmatpush2.bf16.xpose.msra.mxu0 0
        %1187 = vmatprep.mubr.bf16.mxu0 0
        %1188 = vmatmul.mubr.bf16.gmra.mxu0 %v1150
        %v1189 = vpop.f32.mrf.mxu0
        %v1190 = vadd.f32 0.0, %v1189
        %v1191 = vpop.f32.mrf.mxu0
        %v1192 = vpop.f32.mrf.mxu0
        %v1193 = vpop.f32.mrf.mxu0
        %1194 = vdwg.mxu0
        %v1195 = vmul.f32 %v1190, 0.35355338
        %v1196 = vsel %vm813, %v1195, -inf
        %1197 = vmax.xlane.f32.xlu0 %v1196
        %v1198 = vpop.xlane.xlu0 %1197
        %v1199 = vsub.f32 %v1195, %v1198
        %v1200 = vmul.f32 %v1199, 1.442695
        %v1201 = vpow.pop %v1200
        %v1202 = vsel %vm813, %v1201, 0.0
        %1203 = vadd.xlane.f32.xlu0 %v1202
        %v1204 = vpop.xlane.xlu0 %1203
        %v1205 = vrcp.pop %v1204
        %v1206 = vmul.f32 %v1201, %v1205
        %v1207 = vpack.c.bf16 %v1206, %v1206
        %1208 = vrot.lane.b32.xlu0 %v812, 104
        %v1209 = vpop.permute.xlu0 %1208
        %v1211 = vsel %vm813, %v1207, 0
        %v1214 = vsel %vm876, %v1209, 0
        %1216 = vmatprep.subr.bf16.mxu0 0
        %1217 = vmatpush1.bf16.msra.mxu0 0
        %1218 = vmatprep.subr.bf16.mxu0 0
        %1219 = vmatpush1.bf16.msra.mxu0 0
        %1220 = vmatprep.subr.bf16.mxu0 0
        %1221 = vmatpush1.bf16.msra.mxu0 0
        %1222 = vmatprep.subr.bf16.mxu0 0
        %1223 = vmatpush1.bf16.msra.mxu0 0
        %1224 = vmatprep.subr.bf16.mxu0 0
        %1225 = vmatpush1.bf16.msra.mxu0 0
        %1226 = vmatprep.subr.bf16.mxu0 0
        %1227 = vmatpush1.bf16.msra.mxu0 0
        %1228 = vmatprep.subr.bf16.mxu0 0
        %1229 = vmatpush1.bf16.msra.mxu0 0
        %1230 = vmatprep.subr.bf16.mxu0 0
        %1231 = vmatpush1.bf16.msra.mxu0 %v1214
        %1232 = vmatprep.subr.bf16.mxu0 0
        %1233 = vmatpush2.bf16.msra.mxu0 0
        %1234 = vmatprep.subr.bf16.mxu0 0
        %1235 = vmatpush2.bf16.msra.mxu0 0
        %1236 = vmatprep.subr.bf16.mxu0 0
        %1237 = vmatpush2.bf16.msra.mxu0 0
        %1238 = vmatprep.subr.bf16.mxu0 0
        %1239 = vmatpush2.bf16.msra.mxu0 0
        %1240 = vmatprep.subr.bf16.mxu0 0
        %1241 = vmatpush2.bf16.msra.mxu0 0
        %1242 = vmatprep.subr.bf16.mxu0 0
        %1243 = vmatpush2.bf16.msra.mxu0 0
        %1244 = vmatprep.subr.bf16.mxu0 0
        %1245 = vmatpush2.bf16.msra.mxu0 0
        %1246 = vmatprep.subr.bf16.mxu0 0
        %1247 = vmatpush2.bf16.msra.mxu0 0
        %1248 = vmatprep.mubr.bf16.mxu0 0
        %1249 = vmatmul.mubr.bf16.gmra.mxu0 %v1211
        %v1250 = vpop.f32.mrf.mxu0
        %v1251 = vadd.f32 0.0, %v1250
        %v1252 = vpop.f32.mrf.mxu0
        %v1253 = vpop.f32.mrf.mxu0
        %v1254 = vpop.f32.mrf.mxu0
        %1255 = vdwg.mxu0
        %1257 = vrot.lane.b32.xlu0 %v1029, 8
        %v1258 = vpop.permute.xlu0 %1257
        %1261 = vrot.lane.b32.xlu0 %v1140, 16
        %v1262 = vpop.permute.xlu0 %1261
        %1265 = vrot.lane.b32.xlu0 %v1251, 24
        %v1266 = vpop.permute.xlu0 %1265
        %v1268 = vsel %vm813, %v915, %v1258
        %vm1269 = vcmask 130048
        %v1270 = vsel %vm1269, %v1268, %v1262
        %vm1271 = vcmask 195584
        %v1272 = vsel %vm1271, %v1270, %v1266
        %v1273 = vpack.c.bf16 %v1272, %v1272
        %v1274 = vld [vmem:[%s10] sm:$0xf]
        %v1275 = vld [vmem:[%s10 + $0x4] sm:$0xf]
        %v1276 = vld [vmem:[%s10 + $0x8] sm:$0xf]
        %v1277 = vld [vmem:[%s10 + $0xc] sm:$0xf]
        %v1278 = vld [vmem:[%s11] sm:$0x1]
        %v1280 = vlaneseq
        %v1281 = vshrl.u32 %v1280, 7
        %v1282 = vsub.s32 0, %v1281
        %v1283 = vrot.slane %v1278, %v1282
        %v1289 = vunpack.c.l.b16 %v1274
        %v1290 = vunpack.c.l.b16 %v1275
        %v1291 = vunpack.c.l.b16 %v1276
        %v1292 = vunpack.c.l.b16 %v1277
        %v1293 = vpack.c.b16 %v1290, %v1289
        %v1294 = vpack.c.b16 %v1292, %v1291
        %v1298 = vsel %vm569, %v1273, 0
        %1300 = vmatprep.subr.bf16.mxu0 0
        %1301 = vmatpush1.bf16.msra.mxu0 0
        %1302 = vmatprep.subr.bf16.mxu0 0
        %1303 = vmatpush1.bf16.msra.mxu0 0
        %1304 = vmatprep.subr.bf16.mxu0 0
        %1305 = vmatpush1.bf16.msra.mxu0 0
        %1306 = vmatprep.subr.bf16.mxu0 0
        %1307 = vmatpush1.bf16.msra.mxu0 0
        %1308 = vmatprep.subr.bf16.mxu0 0
        %1309 = vmatpush1.bf16.msra.mxu0 0
        %1310 = vmatprep.subr.bf16.mxu0 0
        %1311 = vmatpush1.bf16.msra.mxu0 0
        %1312 = vmatprep.subr.bf16.mxu0 0
        %1313 = vmatpush1.bf16.msra.mxu0 %v1294
        %1314 = vmatprep.subr.bf16.mxu0 0
        %1315 = vmatpush1.bf16.msra.mxu0 %v1293
        %1316 = vmatprep.subr.bf16.mxu0 0
        %1317 = vmatpush2.bf16.msra.mxu0 0
        %1318 = vmatprep.subr.bf16.mxu0 0
        %1319 = vmatpush2.bf16.msra.mxu0 0
        %1320 = vmatprep.subr.bf16.mxu0 0
        %1321 = vmatpush2.bf16.msra.mxu0 0
        %1322 = vmatprep.subr.bf16.mxu0 0
        %1323 = vmatpush2.bf16.msra.mxu0 0
        %1324 = vmatprep.subr.bf16.mxu0 0
        %1325 = vmatpush2.bf16.msra.mxu0 0
        %1326 = vmatprep.subr.bf16.mxu0 0
        %1327 = vmatpush2.bf16.msra.mxu0 0
        %1328 = vmatprep.subr.bf16.mxu0 0
        %1329 = vmatpush2.bf16.msra.mxu0 0
        %1330 = vmatprep.subr.bf16.mxu0 0
        %1331 = vmatpush2.bf16.msra.mxu0 0
        %1332 = vmatprep.mubr.bf16.mxu0 0
        %1333 = vmatmul.mubr.bf16.gmra.mxu0 %v1298
        %v1334 = vpop.f32.mrf.mxu0
        %v1335 = vadd.f32 %v1283, %v1334
        %v1336 = vpop.f32.mrf.mxu0
        %v1337 = vpop.f32.mrf.mxu0
        %v1338 = vpop.f32.mrf.mxu0
        %1339 = vdwg.mxu0
        %v1340 = vadd.f32 %v565, %v1335
        %1341 = vst.msk [vmem:[%s563] sm:$0xff] %vm569, %v1340
        %s1342 = sand.u32 %s321, 1
        %s1343 = scalar_lea.sflag [#allocation4], %s1342
        %s1344 = sand.u32 %s321, 1
        %s1345 = smul.addr %s1344, 8
        %s1346 = scalar_lea.vmem [#allocation16], %s1345
        // Predicated region
        $region101: #{tpu_custom_call.1} parent=67 // pred_check
          %p1347 = pneg %p331
        $region102: #{tpu_custom_call.1} parent=67 // pred_check_branch
          %1349 = sbr.rel (%p1347) target = $region104
        $region103: #{tpu_custom_call.1} parent=67 // pred_region
          %s1351 = ssub.s32 128, 128
          %1352 = vsyncadd %s1343, %s1351
          %s1353 = sadd.s32 %s40, %s39
          %s1354 = smul.addr %s1353, 128
          %s1355 = scalar_lea.hbm %s12, %s1354
          %s1357 = sshll.u32 %s1346, 4
          %s1358 = int_to_ptr.vmem [resolvable:$true] %s1357
          %1360 = dma.vmem_to_hbm [thread:$0]  %s1358, 128, %s1355, %s1343
        $region104: #{tpu_custom_call.1} parent=67 // pred_fallthru
          _
      $region68: #{tpu_custom_call.1} parent=5 // pred_fallthru
        _
      %p1361 = scmp.le.s32.totalorder 2, %s30
      // Predicated region
      $region105: #{tpu_custom_call.1} parent=5 // pred_check
        %p1362 = pneg %p1361
      $region106: #{tpu_custom_call.1} parent=5 // pred_check_branch
        %1364 = sbr.rel (%p1362) target = $region108
      $region107: #{tpu_custom_call.1} parent=5 // pred_region
        %s1365 = ssub.s32 %s30, 2
        // Predicated region
        $region109: #{tpu_custom_call.1} parent=107 // pred_check
          %p1366 = pneg %p337
        $region110: #{tpu_custom_call.1} parent=107 // pred_check_branch
          %1368 = sbr.rel (%p1366) target = $region112
        $region111: #{tpu_custom_call.1} parent=107 // pred_region
          %s1369 = sand.u32 %s322, 1
          %s1370 = scalar_lea.sflag [#allocation4], %s1369
          %s1371 = sand.u32 %s322, 1
          %s1372 = smul.addr %s1371, 8
          %s1373 = scalar_lea.vmem [#allocation16], %s1372
          %1374 = dma.done %s1370, 128
        $region112: #{tpu_custom_call.1} parent=107 // pred_fallthru
          _
      $region108: #{tpu_custom_call.1} parent=5 // pred_fallthru
        _
    $region6: #{tpu_custom_call.1} parent=1 // loop_footer
      %s34 = sadd.s32 1, %s30
    $region7: #{tpu_custom_call.1} parent=1 // loop_footer_branch
      %29 = sbr.rel target = $region3
    $region8: #{tpu_custom_call.1} parent=1 // loop_exit
      _
    %1375 = vsyncpa [#allocation3], 1
    %s1376 = scalar_lea.sflag [#allocation3], 1
    %1377 = vsyncpa %s1376, 1
    %1378 = vsyncpa [#allocation6], 1
    %s1379 = scalar_lea.sflag [#allocation6], 1
    %1380 = vsyncpa %s1379, 1
    %1381 = vsyncpa [#allocation9], 1
    %1382 = vsyncpa [#allocation12], 1
    %1383 = vsyncpa [#allocation15], 1
    %1384 = vsyncpa [#allocation4], 1
    %s1385 = scalar_lea.sflag [#allocation4], 1
    %1386 = vsyncpa %s1385, 1

</llo_original>
